<compile_context>
chip_gen: v7x
topology: tpu7x:2x2x1
jax: 0.10.0
libtpu: 0.0.40
codegen_flags: <defaults>
</compile_context>

<pallas_src>
import math

import jax
import jax.numpy as jnp
from jax import lax
from jax.experimental import pallas as pl
from jax.experimental.pallas import tpu as pltpu

EPS = 1e-8


def _round_up(a, m):
    return ((a + m - 1) // m) * m


def _vmem_capacity_bytes():
    try:
        return int(pltpu.get_tpu_info().vmem_capacity_bytes)
    except Exception:
        return 64 << 20  # conservative (v7x-class) fallback


def _tiling(n, big_vmem):
    """Returns (tile_m, tile_n, padded_N) for the NxN Gram outputs.

    Output lane width is always a multiple of 128 (unmasked, lane-dense vst).
    The kernel is HBM-write-bound on three f32 NxN outputs, so large N uses
    the biggest tiles the per-generation VMEM budget comfortably allows to
    amortize per-grid-step pipeline overhead; small/medium N keeps >= 4 row
    tiles so both v7x TensorCores get work.
    """
    if n <= 1024:
        n_pad = _round_up(n, 128)
        tile_n = n_pad                 # single full-width, lane-dense column tile
        tile_m = min(128, n_pad)       # >= 4 row tiles once N >= 512
        return tile_m, tile_n, n_pad
    n_pad = _round_up(n, 512)
    tile_n = 1024 if n_pad % 1024 == 0 else 512
    # (512, tile_n): 3 outs x 2 bufs x up to 2 MiB = 12 MiB of output
    # double-buffers plus a few MiB of temporaries -- fine on 128-MiB-VMEM
    # chips (v5e/v6e) with an explicit vmem limit, too tight on v7x (64 MiB),
    # which stays at (256, tile_n).
    tile_m = 512 if big_vmem else 256
    return tile_m, tile_n, n_pad


def _gram_kernel(xm_ref, xn_ref, ym_ref, yn_ref,
                 sqxr_ref, sqxc_ref, sqyr_ref, sqyc_ref,
                 ax_ref, ay_ref, axy_ref):
    """One (tile_m, tile_n) block of A_x, A_y and A_x*A_y.

    The Gaussian coefficient is pre-folded into the operands by the wrapper:
    the row operand already carries (-2*coef) and sqxr/sqxc are
    coef*||.||^2 row/column vectors, so the exponent is row + col + matmul,
    clamped at 0 (float cancellation can push the negated distance positive).
    """
    def gram(vm, vn, row, col):
        g = lax.dot_general(vm, vn, (((1,), (1,)), ((), ())),
                            preferred_element_type=jnp.float32)   # (tm, tn)
        return jnp.exp(jnp.minimum(row + col + g, 0.0))

    ax_ref[...] = gram(xm_ref[...], xn_ref[...], sqxr_ref[...], sqxc_ref[...])
    ay_ref[...] = gram(ym_ref[...], yn_ref[...], sqyr_ref[...], sqyc_ref[...])
    # Joint tile straight from the already-written output refs: the ax/ay
    # value temporaries are dead before the second exp, saving a live tile.
    axy_ref[...] = ax_ref[...] * ay_ref[...]


def _normalize_scale(v, n):
    mean = jnp.mean(v, axis=0, keepdims=True)
    # torch.std default is unbiased (divides by N-1); guard N == 1.
    var = jnp.sum((v - mean) ** 2, axis=0, keepdims=True) / max(n - 1, 1)
    return (v - mean) / (jnp.sqrt(var) + EPS)


def _alpha_entropy(a, alpha):
    # TODO(synk): the eigendecomposition (torch.symeig) has no clean Pallas
    # equivalent; it is done with jnp.linalg.eigh in plain JAX.  Eigenvalues
    # are renormalized by their sum, so the dropped trace normalization of the
    # Gram matrices does not change the result.
    lam = jnp.linalg.eigh(a)[0]
    lam = jnp.maximum(lam, 0.0)
    lam = lam / jnp.sum(lam)
    return jnp.log(jnp.sum(lam ** alpha)) / (1.0 - alpha)


def mutual_information(x, y, *, sigma_zero=2.0, alpha=1.01,
                       normalize_scale=True, normalize_dimension=True):
    x = jnp.asarray(x, jnp.float32)
    y = jnp.asarray(y, jnp.float32)
    if x.ndim == 1:
        x = x[:, None]
    if y.ndim == 1:
        y = y[:, None]
    n, dx = x.shape
    ny, dy = y.shape
    assert n == ny, "x and y must have the same number of samples"

    sigma_x = sigma_zero * n ** (-1.0 / (4 + dx))
    sigma_y = sigma_zero * n ** (-1.0 / (4 + dy))
    if normalize_dimension:
        sigma_x *= math.sqrt(dx)
        sigma_y *= math.sqrt(dy)

    # Feature normalization, per-sample squared norms and the Gaussian
    # coefficients are hoisted out of the kernel (computed once, not per tile).
    if normalize_scale:
        x = _normalize_scale(x, n)
        y = _normalize_scale(y, n)
    coef_x = -0.5 / (sigma_x * sigma_x)
    coef_y = -0.5 / (sigma_y * sigma_y)
    xm = x * (-2.0 * coef_x)                 # row operand, folds -2*coef into MXU
    ym = y * (-2.0 * coef_y)
    sqx = coef_x * jnp.sum(x * x, axis=1)    # (N,)  coef * ||x_i||^2
    sqy = coef_y * jnp.sum(y * y, axis=1)

    big_vmem = _vmem_capacity_bytes() >= (96 << 20)   # v5e/v6e 128 MiB, v7x 64 MiB
    tile_m, tile_n, n_pad = _tiling(n, big_vmem)
    if n_pad != n:
        pad = n_pad - n
        x = jnp.pad(x, ((0, pad), (0, 0)))
        y = jnp.pad(y, ((0, pad), (0, 0)))
        xm = jnp.pad(xm, ((0, pad), (0, 0)))
        ym = jnp.pad(ym, ((0, pad), (0, 0)))
        sqx = jnp.pad(sqx, (0, pad))
        sqy = jnp.pad(sqy, (0, pad))
    sqx_row, sqx_col = sqx[:, None], sqx[None, :]
    sqy_row, sqy_col = sqy[:, None], sqy[None, :]

    grid = (n_pad // tile_m, n_pad // tile_n)
    out_tile = pl.BlockSpec((tile_m, tile_n), lambda i, j: (i, j))

    a_x, a_y, a_xy = pl.pallas_call(
        _gram_kernel,
        out_shape=(
            jax.ShapeDtypeStruct((n_pad, n_pad), jnp.float32),
            jax.ShapeDtypeStruct((n_pad, n_pad), jnp.float32),
            jax.ShapeDtypeStruct((n_pad, n_pad), jnp.float32),
        ),
        grid=grid,
        in_specs=[
            pl.BlockSpec((tile_m, dx), lambda i, j: (i, 0)),   # x * (-2 coef_x), rows
            pl.BlockSpec((tile_n, dx), lambda i, j: (j, 0)),   # x, cols
            pl.BlockSpec((tile_m, dy), lambda i, j: (i, 0)),   # y * (-2 coef_y), rows
            pl.BlockSpec((tile_n, dy), lambda i, j: (j, 0)),   # y, cols
            pl.BlockSpec((tile_m, 1), lambda i, j: (i, 0)),    # coef_x ||x_i||^2
            pl.BlockSpec((1, tile_n), lambda i, j: (0, j)),    # coef_x ||x_j||^2
            pl.BlockSpec((tile_m, 1), lambda i, j: (i, 0)),    # coef_y ||y_i||^2
            pl.BlockSpec((1, tile_n), lambda i, j: (0, j)),    # coef_y ||y_j||^2
        ],
        out_specs=(out_tile, out_tile, out_tile),
        compiler_params=pltpu.CompilerParams(
            dimension_semantics=("parallel", "parallel"),
            vmem_limit_bytes=(64 << 20) if big_vmem else (40 << 20)),
    )(xm, x, ym, y, sqx_row, sqx_col, sqy_row, sqy_col)

    if n_pad != n:
        a_x = a_x[:n, :n]
        a_y = a_y[:n, :n]
        a_xy = a_xy[:n, :n]

    s_x = _alpha_entropy(a_x, alpha)
    s_y = _alpha_entropy(a_y, alpha)
    s_xy = _alpha_entropy(a_xy, alpha)
    return s_x + s_y - s_xy


def _reference_mi(x, y, *, sigma_zero, alpha, normalize_scale,
                  normalize_dimension):
    """Pure-JAX reference mirroring the PyTorch module exactly."""
    def gram(v):
        nv, dv = v.shape
        if normalize_scale:
            v = _normalize_scale(v, nv)
        sigma = sigma_zero * nv ** (-1.0 / (4 + dv))
        if normalize_dimension:
            sigma *= math.sqrt(dv)
        diff = v[:, None, :] - v[None, :, :]
        a = jnp.exp(-0.5 * jnp.sum(diff * diff, axis=2) / (sigma * sigma))
        return a / jnp.trace(a)

    a_x = gram(x.astype(jnp.float32))
    a_y = gram(y.astype(jnp.float32))
    a_xy = a_x * a_y
    a_xy = a_xy / jnp.trace(a_xy)
    return (_alpha_entropy(a_x, alpha) + _alpha_entropy(a_y, alpha)
            - _alpha_entropy(a_xy, alpha))


if __name__ == "__main__":
    key = jax.random.PRNGKey(0)
    kx, ky, kx2, ky2 = jax.random.split(key, 4)

    def check(n, dx, dy, key_x, key_y):
        x = jax.random.normal(key_x, (n, dx), dtype=jnp.float32)
        y = jax.random.normal(key_y, (n, dy), dtype=jnp.float32)
        mi = jax.block_until_ready(
            mutual_information(x, y, sigma_zero=2.0, alpha=1.01,
                               normalize_scale=True, normalize_dimension=True))
        assert jnp.isfinite(mi), f"MI is not finite for N={n}"
        mi_ref = jax.block_until_ready(
            _reference_mi(x, y, sigma_zero=2.0, alpha=1.01,
                          normalize_scale=True, normalize_dimension=True))
        assert jnp.abs(mi - mi_ref) < 1e-2 + 1e-2 * jnp.abs(mi_ref), (
            f"MI mismatch at N={n}: pallas={float(mi)} ref={float(mi_ref)}")

    # Small-N path: pad 384 -> 512, (128, 512) lane-dense tiles, grid (4, 1).
    check(384, 16, 8, kx, ky)
    # Large-N tiled path: pad 1152 -> 1536, (512|256, 512) tiles, multi-tile grid.
    check(1152, 8, 4, kx2, ky2)
    print("KERNEL_OK")
</pallas_src>

<mosaic_0001>
module attributes {stable_mosaic.version = 11 : i64} {
  func.func @_gram_kernel(%arg0: i32, %arg1: i32, %arg2: memref<128x16xf32, #tpu.memory_space<vmem>>, %arg3: memref<384x16xf32, #tpu.memory_space<vmem>>, %arg4: memref<128x8xf32, #tpu.memory_space<vmem>>, %arg5: memref<384x8xf32, #tpu.memory_space<vmem>>, %arg6: memref<128x1xf32, #tpu.memory_space<vmem>>, %arg7: memref<1x384xf32, #tpu.memory_space<vmem>>, %arg8: memref<128x1xf32, #tpu.memory_space<vmem>>, %arg9: memref<1x384xf32, #tpu.memory_space<vmem>>, %arg10: memref<128x384xf32, #tpu.memory_space<vmem>>, %arg11: memref<128x384xf32, #tpu.memory_space<vmem>>, %arg12: memref<128x384xf32, #tpu.memory_space<vmem>>) attributes {dimension_semantics = [#tpu.dimension_semantics<parallel>, #tpu.dimension_semantics<parallel>], iteration_bounds = array<i64: 3, 1>, scalar_prefetch = 0 : i64, scratch_operands = 0 : i64, tpu.core_type = #tpu.core_type<tc>, window_params = [{transform_indices = @transform_0, window_bounds = array<i64: 128, 16>}, {transform_indices = @transform_1, window_bounds = array<i64: 384, 16>}, {transform_indices = @transform_2, window_bounds = array<i64: 128, 8>}, {transform_indices = @transform_3, window_bounds = array<i64: 384, 8>}, {transform_indices = @transform_4, window_bounds = array<i64: 128, 1>}, {transform_indices = @transform_5, window_bounds = array<i64: 1, 384>}, {transform_indices = @transform_6, window_bounds = array<i64: 128, 1>}, {transform_indices = @transform_7, window_bounds = array<i64: 1, 384>}, {transform_indices = @transform_8, window_bounds = array<i64: 128, 384>}, {transform_indices = @transform_9, window_bounds = array<i64: 128, 384>}, {transform_indices = @transform_10, window_bounds = array<i64: 128, 384>}]} {
    %c0 = arith.constant 0 : index
    %c0_0 = arith.constant 0 : index
    %0 = vector.load %arg2[%c0, %c0_0] : memref<128x16xf32, #tpu.memory_space<vmem>>, vector<128x16xf32>
    %c0_1 = arith.constant 0 : index
    %c0_2 = arith.constant 0 : index
    %1 = vector.load %arg3[%c0_1, %c0_2] : memref<384x16xf32, #tpu.memory_space<vmem>>, vector<384x16xf32>
    %c0_3 = arith.constant 0 : index
    %c0_4 = arith.constant 0 : index
    %2 = vector.load %arg6[%c0_3, %c0_4] : memref<128x1xf32, #tpu.memory_space<vmem>>, vector<128x1xf32>
    %c0_5 = arith.constant 0 : index
    %c0_6 = arith.constant 0 : index
    %3 = vector.load %arg7[%c0_5, %c0_6] : memref<1x384xf32, #tpu.memory_space<vmem>>, vector<1x384xf32>
    %cst = arith.constant dense<0.000000e+00> : vector<128x384xf32>
    %4 = tpu.matmul %0, %1, %cst {dimension_numbers = #tpu.dot_dimension_numbers<[1], [1], [0], [0], [0, 0, 1, 0], [], []>} : vector<128x16xf32>, vector<384x16xf32>, vector<128x384xf32> -> vector<128x384xf32>
    %5 = vector.broadcast %2 : vector<128x1xf32> to vector<128x384xf32>
    %6 = vector.broadcast %3 : vector<1x384xf32> to vector<128x384xf32>
    %7 = arith.addf %5, %6 : vector<128x384xf32>
    %8 = arith.addf %7, %4 : vector<128x384xf32>
    %cst_7 = arith.constant 0.000000e+00 : f32
    %9 = vector.broadcast %cst_7 : f32 to vector<128x384xf32>
    %10 = arith.minimumf %8, %9 : vector<128x384xf32>
    %11 = math.exp %10 : vector<128x384xf32>
    %c0_8 = arith.constant 0 : index
    %c0_9 = arith.constant 0 : index
    %12 = vector.load %arg10[%c0_8, %c0_9] : memref<128x384xf32, #tpu.memory_space<vmem>>, vector<128x384xf32>
    tpu.vector_store %arg10[%c0_8, %c0_9], %11 {strides = array<i32>} : memref<128x384xf32, #tpu.memory_space<vmem>>, vector<128x384xf32>,
    %c0_10 = arith.constant 0 : index
    %c0_11 = arith.constant 0 : index
    %13 = vector.load %arg4[%c0_10, %c0_11] : memref<128x8xf32, #tpu.memory_space<vmem>>, vector<128x8xf32>
    %c0_12 = arith.constant 0 : index
    %c0_13 = arith.constant 0 : index
    %14 = vector.load %arg5[%c0_12, %c0_13] : memref<384x8xf32, #tpu.memory_space<vmem>>, vector<384x8xf32>
    %c0_14 = arith.constant 0 : index
    %c0_15 = arith.constant 0 : index
    %15 = vector.load %arg8[%c0_14, %c0_15] : memref<128x1xf32, #tpu.memory_space<vmem>>, vector<128x1xf32>
    %c0_16 = arith.constant 0 : index
    %c0_17 = arith.constant 0 : index
    %16 = vector.load %arg9[%c0_16, %c0_17] : memref<1x384xf32, #tpu.memory_space<vmem>>, vector<1x384xf32>
    %cst_18 = arith.constant dense<0.000000e+00> : vector<128x384xf32>
    %17 = tpu.matmul %13, %14, %cst_18 {dimension_numbers = #tpu.dot_dimension_numbers<[1], [1], [0], [0], [0, 0, 1, 0], [], []>} : vector<128x8xf32>, vector<384x8xf32>, vector<128x384xf32> -> vector<128x384xf32>
    %18 = vector.broadcast %15 : vector<128x1xf32> to vector<128x384xf32>
    %19 = vector.broadcast %16 : vector<1x384xf32> to vector<128x384xf32>
    %20 = arith.addf %18, %19 : vector<128x384xf32>
    %21 = arith.addf %20, %17 : vector<128x384xf32>
    %cst_19 = arith.constant 0.000000e+00 : f32
    %22 = vector.broadcast %cst_19 : f32 to vector<128x384xf32>
    %23 = arith.minimumf %21, %22 : vector<128x384xf32>
    %24 = math.exp %23 : vector<128x384xf32>
    %c0_20 = arith.constant 0 : index
    %c0_21 = arith.constant 0 : index
    %25 = vector.load %arg11[%c0_20, %c0_21] : memref<128x384xf32, #tpu.memory_space<vmem>>, vector<128x384xf32>
    tpu.vector_store %arg11[%c0_20, %c0_21], %24 {strides = array<i32>} : memref<128x384xf32, #tpu.memory_space<vmem>>, vector<128x384xf32>,
    %c0_22 = arith.constant 0 : index
    %c0_23 = arith.constant 0 : index
    %26 = vector.load %arg10[%c0_22, %c0_23] : memref<128x384xf32, #tpu.memory_space<vmem>>, vector<128x384xf32>
    %c0_24 = arith.constant 0 : index
    %c0_25 = arith.constant 0 : index
    %27 = vector.load %arg11[%c0_24, %c0_25] : memref<128x384xf32, #tpu.memory_space<vmem>>, vector<128x384xf32>
    %28 = arith.mulf %26, %27 : vector<128x384xf32>
    %c0_26 = arith.constant 0 : index
    %c0_27 = arith.constant 0 : index
    %29 = vector.load %arg12[%c0_26, %c0_27] : memref<128x384xf32, #tpu.memory_space<vmem>>, vector<128x384xf32>
    tpu.vector_store %arg12[%c0_26, %c0_27], %28 {strides = array<i32>} : memref<128x384xf32, #tpu.memory_space<vmem>>, vector<128x384xf32>,
    return
  }
  func.func @transform_0(%arg0: i32, %arg1: i32) -> (i32, i32) {
    %c0_i32 = arith.constant 0 : i32
    %c0_i32_0 = arith.constant 0 : i32
    return %arg0, %c0_i32 : i32, i32
  }
  func.func @transform_1(%arg0: i32, %arg1: i32) -> (i32, i32) {
    %c0_i32 = arith.constant 0 : i32
    %c0_i32_0 = arith.constant 0 : i32
    return %arg1, %c0_i32 : i32, i32
  }
  func.func @transform_2(%arg0: i32, %arg1: i32) -> (i32, i32) {
    %c0_i32 = arith.constant 0 : i32
    %c0_i32_0 = arith.constant 0 : i32
    return %arg0, %c0_i32 : i32, i32
  }
  func.func @transform_3(%arg0: i32, %arg1: i32) -> (i32, i32) {
    %c0_i32 = arith.constant 0 : i32
    %c0_i32_0 = arith.constant 0 : i32
    return %arg1, %c0_i32 : i32, i32
  }
  func.func @transform_4(%arg0: i32, %arg1: i32) -> (i32, i32) {
    %c0_i32 = arith.constant 0 : i32
    %c0_i32_0 = arith.constant 0 : i32
    return %arg0, %c0_i32 : i32, i32
  }
  func.func @transform_5(%arg0: i32, %arg1: i32) -> (i32, i32) {
    %c0_i32 = arith.constant 0 : i32
    %c0_i32_0 = arith.constant 0 : i32
    return %c0_i32, %arg1 : i32, i32
  }
  func.func @transform_6(%arg0: i32, %arg1: i32) -> (i32, i32) {
    %c0_i32 = arith.constant 0 : i32
    %c0_i32_0 = arith.constant 0 : i32
    return %arg0, %c0_i32 : i32, i32
  }
  func.func @transform_7(%arg0: i32, %arg1: i32) -> (i32, i32) {
    %c0_i32 = arith.constant 0 : i32
    %c0_i32_0 = arith.constant 0 : i32
    return %c0_i32, %arg1 : i32, i32
  }
  func.func @transform_8(%arg0: i32, %arg1: i32) -> (i32, i32) {
    %c0_i32 = arith.constant 0 : i32
    return %arg0, %arg1 : i32, i32
  }
  func.func @transform_9(%arg0: i32, %arg1: i32) -> (i32, i32) {
    %c0_i32 = arith.constant 0 : i32
    return %arg0, %arg1 : i32, i32
  }
  func.func @transform_10(%arg0: i32, %arg1: i32) -> (i32, i32) {
    %c0_i32 = arith.constant 0 : i32
    return %arg0, %arg1 : i32, i32
  }
}

</mosaic_0001>

<llo_original>
// kernel: tpu_custom_call.1
$region0: #{tpu_custom_call.1}
  #allocation0 [shape = 'u32[]', space=smem, size = 0x4, offset = 0x4, fixed_abs, tag = 'smem constant byte address 0x4 - core index']
  #allocation1 [shape = 'u32[144,128]{1,0:T(1,128)}', space=vmem, size = 0x12000, scoped, tag = 'internal scratch']
  %s0 = inlined_call_operand.vmem [shape: f32[384,16], index: 0, kind: input, shape index: {}]
  %s1 = inlined_call_operand.vmem [shape: f32[384,16], index: 1, kind: input, shape index: {}]
  %s2 = inlined_call_operand.vmem [shape: f32[384,8], index: 2, kind: input, shape index: {}]
  %s3 = inlined_call_operand.vmem [shape: f32[384,8], index: 3, kind: input, shape index: {}]
  %s4 = inlined_call_operand.vmem [shape: f32[384,1], index: 4, kind: input, shape index: {}]
  %s5 = inlined_call_operand.vmem [shape: f32[1,384], index: 5, kind: input, shape index: {}]
  %s6 = inlined_call_operand.vmem [shape: f32[384,1], index: 6, kind: input, shape index: {}]
  %s7 = inlined_call_operand.vmem [shape: f32[1,384], index: 7, kind: input, shape index: {}]
  %s8 = inlined_call_operand.hbm [shape: f32[384,384], index: 8, kind: output, shape index: {0}]
  %s9 = inlined_call_operand.hbm [shape: f32[384,384], index: 9, kind: output, shape index: {1}]
  %s10 = inlined_call_operand.hbm [shape: f32[384,384], index: 10, kind: output, shape index: {2}]
  %11 = xla_tuple %s8, %s9, %s10
  %s12 = sld [smem:[#allocation0]]
  $region81: #{tpu_custom_call.1} parent=0
    _
  %s14 = ssub.s32 1, %s12
  %s15 = scalar_select 0, %s14, %s12
  $region1: #{tpu_custom_call.1} parent=0
    #allocation2 [shape = 'u8[393216]{0}', space=vmem, size = 0x60000, scoped, tag = 'output window, operand 0']
    #allocation3 [shape = 's32[2]{0}', space=sflag, size = 0x8, scoped, tag = 'scoped memory for tpu_custom_call.1']
    #allocation4 [shape = 'u8[393216]{0}', space=vmem, size = 0x60000, scoped, tag = 'output window, operand 1']
    #allocation5 [shape = 's32[2]{0}', space=sflag, size = 0x8, scoped, tag = 'scoped memory for tpu_custom_call.1']
    #allocation6 [shape = 'u8[393216]{0}', space=vmem, size = 0x60000, scoped, tag = 'output window, operand 2']
    %16 = vsyncpa [#allocation3], 0
    %s17 = scalar_lea.sflag [#allocation3], 1
    %18 = vsyncpa %s17, 0
    %19 = vsyncpa [#allocation5], 0
    %s20 = scalar_lea.sflag [#allocation5], 1
    %21 = vsyncpa %s20, 0
    loop: start=0, step=1, limit=5
    $region2: #{tpu_custom_call.1} parent=1 // loop_pre_header
      _
    $region3: #{tpu_custom_call.1} parent=1 // loop_header
      %s23 = sphi 0, %s27
      %p24 = scmp.ge.s32.totalorder %s23, 5
      %s30 = sphi 0, %s42
      %s31 = sphi 0, %s38
      %s32 = sphi 0, %s30
      %s33 = sphi 0, %s31
      %s34 = sphi 0, %s32
      %s35 = sphi 0, %s33
      %s45 = sphi 0, %s47
      %s48 = sphi 0, %s45
      %s49 = sphi 0, %s48
      %s65 = sphi 0, %s49
      %s71 = sphi 0, %s73
      %s74 = sphi 0, %s71
      %s75 = sphi 0, %s74
      %s91 = sphi 0, %s75
      %s97 = sphi 0, %s99
      %s100 = sphi 0, %s97
      %s101 = sphi 0, %s100
      %s117 = sphi 0, %s101
      %s123 = sphi 0, %s125
      %s126 = sphi 0, %s123
      %s127 = sphi 0, %s126
      %s143 = sphi 0, %s127
      %s149 = sphi 0, %s151
      %s152 = sphi 0, %s149
      %s153 = sphi 0, %s152
      %s169 = sphi 0, %s153
      %s175 = sphi 0, %s177
      %s178 = sphi 0, %s175
      %s179 = sphi 0, %s178
      %s195 = sphi 0, %s179
      %s201 = sphi 0, %s203
      %s204 = sphi 0, %s201
      %s205 = sphi 0, %s204
      %s221 = sphi 0, %s205
      %s227 = sphi 0, %s229
      %s230 = sphi 0, %s227
      %s231 = sphi 0, %s230
      %s247 = sphi 0, %s231
      %s255 = sphi 0, %s257
      %s258 = sphi 0, %s255
      %s259 = sphi 0, %s258
      %s275 = sphi 0, %s259
      %s283 = sphi 0, %s285
      %s286 = sphi 0, %s283
      %s287 = sphi 0, %s286
      %s303 = sphi 0, %s287
      %s311 = sphi 0, %s313
      %s314 = sphi 0, %s311
      %s315 = sphi 0, %s314
      %s331 = sphi 0, %s315
    $region4: #{tpu_custom_call.1} parent=1 // loop_header_branch
      %26 = sbr.rel (%p24) target = $region8
    $region5: #{tpu_custom_call.1} parent=1 // loop_body
      %s28 = ssub.s32 %s23, 1
      %s29 = ssub.s32 %s23, 2
      %s36 = sadd.s32 1, %s31
      %p37 = scmp.ge.s32.totalorder %s36, 1
      %s38 = scalar_select %p37, 0, %s36
      %s39 = sadd.s32 1, %s30
      %s40 = scalar_select %p37, %s39, %s30
      %p41 = scmp.ge.s32.totalorder %s40, 3
      %s42 = scalar_select %p41, 0, %s40
      %s43 = ssub.s32 %s30, %s42
      %p44 = scmp.eq.s32.totalorder %s43, 0
      %s46 = sadd.s32 %s45, 1
      %s47 = scalar_select %p44, %s45, %s46
      %p50 = pneg %p44
      %p51 = scmp.eq.s32.totalorder %s23, 2
      %p52 = por %p50, %p51
      %p53 = scmp.ne.s32.totalorder %s45, %s48
      %p54 = scmp.eq.s32.totalorder %s23, 0
      %p55 = por %p53, %p54
      %p56 = scmp.ne.s32.totalorder %s45, %s48
      %p57 = scmp.eq.s32.totalorder %s28, 2
      %p58 = por %p56, %p57
      %p59 = scmp.ne.s32.totalorder %s48, %s49
      %p60 = scmp.eq.s32.totalorder %s28, 0
      %p61 = por %p59, %p60
      %p62 = scmp.ne.s32.totalorder %s48, %s49
      %p63 = scmp.eq.s32.totalorder %s29, 2
      %p64 = por %p62, %p63
      %p66 = scmp.ne.s32.totalorder %s49, %s65
      %p67 = scmp.eq.s32.totalorder %s29, 0
      %p68 = por %p66, %p67
      %s69 = ssub.s32 %s31, %s38
      %p70 = scmp.eq.s32.totalorder %s69, 0
      %s72 = sadd.s32 %s71, 1
      %s73 = scalar_select %p70, %s71, %s72
      %p76 = pneg %p70
      %p77 = scmp.eq.s32.totalorder %s23, 2
      %p78 = por %p76, %p77
      %p79 = scmp.ne.s32.totalorder %s71, %s74
      %p80 = scmp.eq.s32.totalorder %s23, 0
      %p81 = por %p79, %p80
      %p82 = scmp.ne.s32.totalorder %s71, %s74
      %p83 = scmp.eq.s32.totalorder %s28, 2
      %p84 = por %p82, %p83
      %p85 = scmp.ne.s32.totalorder %s74, %s75
      %p86 = scmp.eq.s32.totalorder %s28, 0
      %p87 = por %p85, %p86
      %p88 = scmp.ne.s32.totalorder %s74, %s75
      %p89 = scmp.eq.s32.totalorder %s29, 2
      %p90 = por %p88, %p89
      %p92 = scmp.ne.s32.totalorder %s75, %s91
      %p93 = scmp.eq.s32.totalorder %s29, 0
      %p94 = por %p92, %p93
      %s95 = ssub.s32 %s30, %s42
      %p96 = scmp.eq.s32.totalorder %s95, 0
      %s98 = sadd.s32 %s97, 1
      %s99 = scalar_select %p96, %s97, %s98
      %p102 = pneg %p96
      %p103 = scmp.eq.s32.totalorder %s23, 2
      %p104 = por %p102, %p103
      %p105 = scmp.ne.s32.totalorder %s97, %s100
      %p106 = scmp.eq.s32.totalorder %s23, 0
      %p107 = por %p105, %p106
      %p108 = scmp.ne.s32.totalorder %s97, %s100
      %p109 = scmp.eq.s32.totalorder %s28, 2
      %p110 = por %p108, %p109
      %p111 = scmp.ne.s32.totalorder %s100, %s101
      %p112 = scmp.eq.s32.totalorder %s28, 0
      %p113 = por %p111, %p112
      %p114 = scmp.ne.s32.totalorder %s100, %s101
      %p115 = scmp.eq.s32.totalorder %s29, 2
      %p116 = por %p114, %p115
      %p118 = scmp.ne.s32.totalorder %s101, %s117
      %p119 = scmp.eq.s32.totalorder %s29, 0
      %p120 = por %p118, %p119
      %s121 = ssub.s32 %s31, %s38
      %p122 = scmp.eq.s32.totalorder %s121, 0
      %s124 = sadd.s32 %s123, 1
      %s125 = scalar_select %p122, %s123, %s124
      %p128 = pneg %p122
      %p129 = scmp.eq.s32.totalorder %s23, 2
      %p130 = por %p128, %p129
      %p131 = scmp.ne.s32.totalorder %s123, %s126
      %p132 = scmp.eq.s32.totalorder %s23, 0
      %p133 = por %p131, %p132
      %p134 = scmp.ne.s32.totalorder %s123, %s126
      %p135 = scmp.eq.s32.totalorder %s28, 2
      %p136 = por %p134, %p135
      %p137 = scmp.ne.s32.totalorder %s126, %s127
      %p138 = scmp.eq.s32.totalorder %s28, 0
      %p139 = por %p137, %p138
      %p140 = scmp.ne.s32.totalorder %s126, %s127
      %p141 = scmp.eq.s32.totalorder %s29, 2
      %p142 = por %p140, %p141
      %p144 = scmp.ne.s32.totalorder %s127, %s143
      %p145 = scmp.eq.s32.totalorder %s29, 0
      %p146 = por %p144, %p145
      %s147 = ssub.s32 %s30, %s42
      %p148 = scmp.eq.s32.totalorder %s147, 0
      %s150 = sadd.s32 %s149, 1
      %s151 = scalar_select %p148, %s149, %s150
      %p154 = pneg %p148
      %p155 = scmp.eq.s32.totalorder %s23, 2
      %p156 = por %p154, %p155
      %p157 = scmp.ne.s32.totalorder %s149, %s152
      %p158 = scmp.eq.s32.totalorder %s23, 0
      %p159 = por %p157, %p158
      %p160 = scmp.ne.s32.totalorder %s149, %s152
      %p161 = scmp.eq.s32.totalorder %s28, 2
      %p162 = por %p160, %p161
      %p163 = scmp.ne.s32.totalorder %s152, %s153
      %p164 = scmp.eq.s32.totalorder %s28, 0
      %p165 = por %p163, %p164
      %p166 = scmp.ne.s32.totalorder %s152, %s153
      %p167 = scmp.eq.s32.totalorder %s29, 2
      %p168 = por %p166, %p167
      %p170 = scmp.ne.s32.totalorder %s153, %s169
      %p171 = scmp.eq.s32.totalorder %s29, 0
      %p172 = por %p170, %p171
      %s173 = ssub.s32 %s31, %s38
      %p174 = scmp.eq.s32.totalorder %s173, 0
      %s176 = sadd.s32 %s175, 1
      %s177 = scalar_select %p174, %s175, %s176
      %p180 = pneg %p174
      %p181 = scmp.eq.s32.totalorder %s23, 2
      %p182 = por %p180, %p181
      %p183 = scmp.ne.s32.totalorder %s175, %s178
      %p184 = scmp.eq.s32.totalorder %s23, 0
      %p185 = por %p183, %p184
      %p186 = scmp.ne.s32.totalorder %s175, %s178
      %p187 = scmp.eq.s32.totalorder %s28, 2
      %p188 = por %p186, %p187
      %p189 = scmp.ne.s32.totalorder %s178, %s179
      %p190 = scmp.eq.s32.totalorder %s28, 0
      %p191 = por %p189, %p190
      %p192 = scmp.ne.s32.totalorder %s178, %s179
      %p193 = scmp.eq.s32.totalorder %s29, 2
      %p194 = por %p192, %p193
      %p196 = scmp.ne.s32.totalorder %s179, %s195
      %p197 = scmp.eq.s32.totalorder %s29, 0
      %p198 = por %p196, %p197
      %s199 = ssub.s32 %s30, %s42
      %p200 = scmp.eq.s32.totalorder %s199, 0
      %s202 = sadd.s32 %s201, 1
      %s203 = scalar_select %p200, %s201, %s202
      %p206 = pneg %p200
      %p207 = scmp.eq.s32.totalorder %s23, 2
      %p208 = por %p206, %p207
      %p209 = scmp.ne.s32.totalorder %s201, %s204
      %p210 = scmp.eq.s32.totalorder %s23, 0
      %p211 = por %p209, %p210
      %p212 = scmp.ne.s32.totalorder %s201, %s204
      %p213 = scmp.eq.s32.totalorder %s28, 2
      %p214 = por %p212, %p213
      %p215 = scmp.ne.s32.totalorder %s204, %s205
      %p216 = scmp.eq.s32.totalorder %s28, 0
      %p217 = por %p215, %p216
      %p218 = scmp.ne.s32.totalorder %s204, %s205
      %p219 = scmp.eq.s32.totalorder %s29, 2
      %p220 = por %p218, %p219
      %p222 = scmp.ne.s32.totalorder %s205, %s221
      %p223 = scmp.eq.s32.totalorder %s29, 0
      %p224 = por %p222, %p223
      %s225 = ssub.s32 %s31, %s38
      %p226 = scmp.eq.s32.totalorder %s225, 0
      %s228 = sadd.s32 %s227, 1
      %s229 = scalar_select %p226, %s227, %s228
      %p232 = pneg %p226
      %p233 = scmp.eq.s32.totalorder %s23, 2
      %p234 = por %p232, %p233
      %p235 = scmp.ne.s32.totalorder %s227, %s230
      %p236 = scmp.eq.s32.totalorder %s23, 0
      %p237 = por %p235, %p236
      %p238 = scmp.ne.s32.totalorder %s227, %s230
      %p239 = scmp.eq.s32.totalorder %s28, 2
      %p240 = por %p238, %p239
      %p241 = scmp.ne.s32.totalorder %s230, %s231
      %p242 = scmp.eq.s32.totalorder %s28, 0
      %p243 = por %p241, %p242
      %p244 = scmp.ne.s32.totalorder %s230, %s231
      %p245 = scmp.eq.s32.totalorder %s29, 2
      %p246 = por %p244, %p245
      %p248 = scmp.ne.s32.totalorder %s231, %s247
      %p249 = scmp.eq.s32.totalorder %s29, 0
      %p250 = por %p248, %p249
      %s251 = ssub.s32 %s30, %s42
      %s252 = ssub.s32 %s31, %s38
      %s253 = sor.u32 %s251, %s252
      %p254 = scmp.eq.s32.totalorder %s253, 0
      %s256 = sadd.s32 %s255, 1
      %s257 = scalar_select %p254, %s255, %s256
      %p260 = pneg %p254
      %p261 = scmp.eq.s32.totalorder %s23, 2
      %p262 = por %p260, %p261
      %p263 = scmp.ne.s32.totalorder %s255, %s258
      %p264 = scmp.eq.s32.totalorder %s23, 0
      %p265 = por %p263, %p264
      %p266 = scmp.ne.s32.totalorder %s255, %s258
      %p267 = scmp.eq.s32.totalorder %s28, 2
      %p268 = por %p266, %p267
      %p269 = scmp.ne.s32.totalorder %s258, %s259
      %p270 = scmp.eq.s32.totalorder %s28, 0
      %p271 = por %p269, %p270
      %p272 = scmp.ne.s32.totalorder %s258, %s259
      %p273 = scmp.eq.s32.totalorder %s29, 2
      %p274 = por %p272, %p273
      %p276 = scmp.ne.s32.totalorder %s259, %s275
      %p277 = scmp.eq.s32.totalorder %s29, 0
      %p278 = por %p276, %p277
      %s279 = ssub.s32 %s30, %s42
      %s280 = ssub.s32 %s31, %s38
      %s281 = sor.u32 %s279, %s280
      %p282 = scmp.eq.s32.totalorder %s281, 0
      %s284 = sadd.s32 %s283, 1
      %s285 = scalar_select %p282, %s283, %s284
      %p288 = pneg %p282
      %p289 = scmp.eq.s32.totalorder %s23, 2
      %p290 = por %p288, %p289
      %p291 = scmp.ne.s32.totalorder %s283, %s286
      %p292 = scmp.eq.s32.totalorder %s23, 0
      %p293 = por %p291, %p292
      %p294 = scmp.ne.s32.totalorder %s283, %s286
      %p295 = scmp.eq.s32.totalorder %s28, 2
      %p296 = por %p294, %p295
      %p297 = scmp.ne.s32.totalorder %s286, %s287
      %p298 = scmp.eq.s32.totalorder %s28, 0
      %p299 = por %p297, %p298
      %p300 = scmp.ne.s32.totalorder %s286, %s287
      %p301 = scmp.eq.s32.totalorder %s29, 2
      %p302 = por %p300, %p301
      %p304 = scmp.ne.s32.totalorder %s287, %s303
      %p305 = scmp.eq.s32.totalorder %s29, 0
      %p306 = por %p304, %p305
      %s307 = ssub.s32 %s30, %s42
      %s308 = ssub.s32 %s31, %s38
      %s309 = sor.u32 %s307, %s308
      %p310 = scmp.eq.s32.totalorder %s309, 0
      %s312 = sadd.s32 %s311, 1
      %s313 = scalar_select %p310, %s311, %s312
      %p316 = pneg %p310
      %p317 = scmp.eq.s32.totalorder %s23, 2
      %p318 = por %p316, %p317
      %p319 = scmp.ne.s32.totalorder %s311, %s314
      %p320 = scmp.eq.s32.totalorder %s23, 0
      %p321 = por %p319, %p320
      %p322 = scmp.ne.s32.totalorder %s311, %s314
      %p323 = scmp.eq.s32.totalorder %s28, 2
      %p324 = por %p322, %p323
      %p325 = scmp.ne.s32.totalorder %s314, %s315
      %p326 = scmp.eq.s32.totalorder %s28, 0
      %p327 = por %p325, %p326
      %p328 = scmp.ne.s32.totalorder %s314, %s315
      %p329 = scmp.eq.s32.totalorder %s29, 2
      %p330 = por %p328, %p329
      %p332 = scmp.ne.s32.totalorder %s315, %s331
      %p333 = scmp.eq.s32.totalorder %s29, 0
      %p334 = por %p332, %p333
      %p335 = scmp.le.s32.totalorder 1, %s23
      %p336 = scmp.lt.s32.totalorder %s23, 4
      %p337 = pnand %p335, %p336
      %p338 = pneg %p337
      // Predicated region
      $region9: #{tpu_custom_call.1} parent=5 // pred_check
        _
      $region10: #{tpu_custom_call.1} parent=5 // pred_check_branch
        %340 = sbr.rel (%p337) target = $region12
      $region11: #{tpu_custom_call.1} parent=5 // pred_region
        %s341 = ssub.s32 %s23, 1
        // Predicated region
        $region13: #{tpu_custom_call.1} parent=11 // pred_check
          %p342 = pneg %p87
        $region14: #{tpu_custom_call.1} parent=11 // pred_check_branch
          %344 = sbr.rel (%p342) target = $region16
        $region15: #{tpu_custom_call.1} parent=11 // pred_region
          %s345 = smul.u32 48, %s33
          %p346 = scmp.lt.s32.totalorder %s345, 47
          %s347 = scalar_select %p346, %s345, 47
          %s348 = smul.addr %s347, 8
          %s349 = scalar_lea.vmem %s1, %s348
          %s350 = smul.u32 48, %s33
        $region16: #{tpu_custom_call.1} parent=11 // pred_fallthru
          _
        // Predicated region
        $region17: #{tpu_custom_call.1} parent=11 // pred_check
          %p351 = pneg %p139
        $region18: #{tpu_custom_call.1} parent=11 // pred_check_branch
          %353 = sbr.rel (%p351) target = $region20
        $region19: #{tpu_custom_call.1} parent=11 // pred_region
          %s354 = smul.u32 48, %s33
          %p355 = scmp.lt.s32.totalorder %s354, 47
          %s356 = scalar_select %p355, %s354, 47
          %s357 = smul.addr %s356, 8
          %s358 = scalar_lea.vmem %s3, %s357
          %s359 = smul.u32 48, %s33
        $region20: #{tpu_custom_call.1} parent=11 // pred_fallthru
          _
        // Predicated region
        $region21: #{tpu_custom_call.1} parent=11 // pred_check
          %p360 = pneg %p191
        $region22: #{tpu_custom_call.1} parent=11 // pred_check_branch
          %362 = sbr.rel (%p360) target = $region24
        $region23: #{tpu_custom_call.1} parent=11 // pred_region
          %s363 = smul.u32 3, %s33
          %p364 = scmp.lt.s32.totalorder %s363, 2
          %s365 = scalar_select %p364, %s363, 2
          %s366 = scalar_lea.vmem %s5, %s365
          %s367 = smul.u32 3, %s33
        $region24: #{tpu_custom_call.1} parent=11 // pred_fallthru
          _
        // Predicated region
        $region25: #{tpu_custom_call.1} parent=11 // pred_check
          %p368 = pneg %p243
        $region26: #{tpu_custom_call.1} parent=11 // pred_check_branch
          %370 = sbr.rel (%p368) target = $region28
        $region27: #{tpu_custom_call.1} parent=11 // pred_region
          %s371 = smul.u32 3, %s33
          %p372 = scmp.lt.s32.totalorder %s371, 2
          %s373 = scalar_select %p372, %s371, 2
          %s374 = scalar_lea.vmem %s7, %s373
          %s375 = smul.u32 3, %s33
        $region28: #{tpu_custom_call.1} parent=11 // pred_fallthru
          _
      $region12: #{tpu_custom_call.1} parent=5 // pred_fallthru
        _
      %p376 = scmp.lt.s32.totalorder %s23, 3
      // Predicated region
      $region29: #{tpu_custom_call.1} parent=5 // pred_check
        %p377 = pneg %p376
      $region30: #{tpu_custom_call.1} parent=5 // pred_check_branch
        %379 = sbr.rel (%p377) target = $region32
      $region31: #{tpu_custom_call.1} parent=5 // pred_region
        // Predicated region
        $region33: #{tpu_custom_call.1} parent=31 // pred_check
          %p380 = pneg %p55
        $region34: #{tpu_custom_call.1} parent=31 // pred_check_branch
          %382 = sbr.rel (%p380) target = $region36
        $region35: #{tpu_custom_call.1} parent=31 // pred_region
          %s383 = smul.u32 16, %s30
          %p384 = scmp.lt.s32.totalorder %s383, 47
          %s385 = scalar_select %p384, %s383, 47
          %s386 = smul.addr %s385, 8
          %s387 = scalar_lea.vmem %s0, %s386
          %s388 = smul.u32 16, %s30
        $region36: #{tpu_custom_call.1} parent=31 // pred_fallthru
          _
        // Predicated region
        $region37: #{tpu_custom_call.1} parent=31 // pred_check
          %p389 = pneg %p107
        $region38: #{tpu_custom_call.1} parent=31 // pred_check_branch
          %391 = sbr.rel (%p389) target = $region40
        $region39: #{tpu_custom_call.1} parent=31 // pred_region
          %s392 = smul.u32 16, %s30
          %p393 = scmp.lt.s32.totalorder %s392, 47
          %s394 = scalar_select %p393, %s392, 47
          %s395 = smul.addr %s394, 8
          %s396 = scalar_lea.vmem %s2, %s395
          %s397 = smul.u32 16, %s30
        $region40: #{tpu_custom_call.1} parent=31 // pred_fallthru
          _
        // Predicated region
        $region41: #{tpu_custom_call.1} parent=31 // pred_check
          %p398 = pneg %p159
        $region42: #{tpu_custom_call.1} parent=31 // pred_check_branch
          %400 = sbr.rel (%p398) target = $region44
        $region43: #{tpu_custom_call.1} parent=31 // pred_region
          %s401 = smul.u32 16, %s30
          %p402 = scmp.lt.s32.totalorder %s401, 47
          %s403 = scalar_select %p402, %s401, 47
          %s404 = smul.addr %s403, 8
          %s405 = scalar_lea.vmem %s4, %s404
          %s406 = smul.u32 16, %s30
        $region44: #{tpu_custom_call.1} parent=31 // pred_fallthru
          _
        // Predicated region
        $region45: #{tpu_custom_call.1} parent=31 // pred_check
          %p407 = pneg %p211
        $region46: #{tpu_custom_call.1} parent=31 // pred_check_branch
          %409 = sbr.rel (%p407) target = $region48
        $region47: #{tpu_custom_call.1} parent=31 // pred_region
          %s410 = smul.u32 16, %s30
          %p411 = scmp.lt.s32.totalorder %s410, 47
          %s412 = scalar_select %p411, %s410, 47
          %s413 = smul.addr %s412, 8
          %s414 = scalar_lea.vmem %s6, %s413
          %s415 = smul.u32 16, %s30
        $region48: #{tpu_custom_call.1} parent=31 // pred_fallthru
          _
      $region32: #{tpu_custom_call.1} parent=5 // pred_fallthru
        _
      %p416 = scmp.le.s32.totalorder 1, %s23
      %p417 = scmp.lt.s32.totalorder %s23, 4
      %p418 = pnand %p416, %p417
      %p419 = pneg %p418
      // Predicated region
      $region49: #{tpu_custom_call.1} parent=5 // pred_check
        _
      $region50: #{tpu_custom_call.1} parent=5 // pred_check_branch
        %421 = sbr.rel (%p418) target = $region52
      $region51: #{tpu_custom_call.1} parent=5 // pred_region
        %s422 = ssub.s32 %s23, 1
        %s423 = smul.u32 16, %s32
        %p424 = scmp.lt.s32.totalorder %s423, 47
        %s425 = scalar_select %p424, %s423, 47
        %s426 = smul.addr %s425, 8
        %s427 = scalar_lea.vmem %s0, %s426
        %p428 = pneg %p61
        %p429 = pneg %p58
        %s430 = smul.u32 48, %s33
        %p431 = scmp.lt.s32.totalorder %s430, 47
        %s432 = scalar_select %p431, %s430, 47
        %s433 = smul.addr %s432, 8
        %s434 = scalar_lea.vmem %s1, %s433
        %p435 = pneg %p87
        %p436 = pneg %p84
        %s437 = smul.u32 16, %s32
        %p438 = scmp.lt.s32.totalorder %s437, 47
        %s439 = scalar_select %p438, %s437, 47
        %s440 = smul.addr %s439, 8
        %s441 = scalar_lea.vmem %s2, %s440
        %p442 = pneg %p113
        %p443 = pneg %p110
        %s444 = smul.u32 48, %s33
        %p445 = scmp.lt.s32.totalorder %s444, 47
        %s446 = scalar_select %p445, %s444, 47
        %s447 = smul.addr %s446, 8
        %s448 = scalar_lea.vmem %s3, %s447
        %p449 = pneg %p139
        %p450 = pneg %p136
        %s451 = smul.u32 16, %s32
        %p452 = scmp.lt.s32.totalorder %s451, 47
        %s453 = scalar_select %p452, %s451, 47
        %s454 = smul.addr %s453, 8
        %s455 = scalar_lea.vmem %s4, %s454
        %p456 = pneg %p165
        %p457 = pneg %p162
        %s458 = smul.u32 3, %s33
        %p459 = scmp.lt.s32.totalorder %s458, 2
        %s460 = scalar_select %p459, %s458, 2
        %s461 = scalar_lea.vmem %s5, %s460
        %p462 = pneg %p191
        %p463 = pneg %p188
        %s464 = smul.u32 16, %s32
        %p465 = scmp.lt.s32.totalorder %s464, 47
        %s466 = scalar_select %p465, %s464, 47
        %s467 = smul.addr %s466, 8
        %s468 = scalar_lea.vmem %s6, %s467
        %p469 = pneg %p217
        %p470 = pneg %p214
        %s471 = smul.u32 3, %s33
        %p472 = scmp.lt.s32.totalorder %s471, 2
        %s473 = scalar_select %p472, %s471, 2
        %s474 = scalar_lea.vmem %s7, %s473
        %p475 = pneg %p243
        %p476 = pneg %p240
        %p477 = pneg %p271
        %p478 = pneg %p268
        %s479 = sand.u32 %s258, 1
        %s480 = scalar_lea.sflag [#allocation3], %s479
        %s481 = sand.u32 %s258, 1
        %s482 = smul.addr %s481, 384
        %s483 = scalar_lea.vmem [#allocation2], %s482
        %p484 = pneg %p299
        %p485 = pneg %p296
        %s486 = sand.u32 %s28, 1
        %s487 = scalar_lea.sflag [#allocation5], %s486
        %s488 = sand.u32 %s286, 1
        %s489 = smul.addr %s488, 384
        %s490 = scalar_lea.vmem [#allocation4], %s489
        %p491 = pneg %p327
        %p492 = pneg %p324
        %s493 = sand.u32 %s28, 1
        %s494 = scalar_lea.sflag [#allocation5], %s493
        %s495 = sand.u32 %s314, 1
        %s496 = smul.addr %s495, 384
        %s497 = scalar_lea.vmem [#allocation6], %s496
        %s498 = smul.u32 16, %s32
        %p499 = scmp.lt.s32.totalorder %s498, 47
        %s500 = scalar_select %p499, %s498, 47
        %s501 = smul.addr %s500, 8
        %s502 = scalar_lea.vmem %s0, %s501
        %s503 = smul.u32 16, %s32
        %s504 = smul.u32 48, %s33
        %p505 = scmp.lt.s32.totalorder %s504, 47
        %s506 = scalar_select %p505, %s504, 47
        %s507 = smul.addr %s506, 8
        %s508 = scalar_lea.vmem %s1, %s507
        %s509 = smul.u32 48, %s33
        %s510 = smul.u32 16, %s32
        %p511 = scmp.lt.s32.totalorder %s510, 47
        %s512 = scalar_select %p511, %s510, 47
        %s513 = smul.addr %s512, 8
        %s514 = scalar_lea.vmem %s2, %s513
        %s515 = smul.u32 16, %s32
        %s516 = smul.u32 48, %s33
        %p517 = scmp.lt.s32.totalorder %s516, 47
        %s518 = scalar_select %p517, %s516, 47
        %s519 = smul.addr %s518, 8
        %s520 = scalar_lea.vmem %s3, %s519
        %s521 = smul.u32 48, %s33
        %s522 = smul.u32 16, %s32
        %p523 = scmp.lt.s32.totalorder %s522, 47
        %s524 = scalar_select %p523, %s522, 47
        %s525 = smul.addr %s524, 8
        %s526 = scalar_lea.vmem %s4, %s525
        %s527 = smul.u32 16, %s32
        %s528 = smul.u32 3, %s33
        %p529 = scmp.lt.s32.totalorder %s528, 2
        %s530 = scalar_select %p529, %s528, 2
        %s531 = scalar_lea.vmem %s5, %s530
        %s532 = smul.u32 3, %s33
        %s533 = smul.u32 16, %s32
        %p534 = scmp.lt.s32.totalorder %s533, 47
        %s535 = scalar_select %p534, %s533, 47
        %s536 = smul.addr %s535, 8
        %s537 = scalar_lea.vmem %s6, %s536
        %s538 = smul.u32 16, %s32
        %s539 = smul.u32 3, %s33
        %p540 = scmp.lt.s32.totalorder %s539, 2
        %s541 = scalar_select %p540, %s539, 2
        %s542 = scalar_lea.vmem %s7, %s541
        %s543 = smul.u32 3, %s33
        %s544 = smul.u32 16, %s32
        %s545 = smul.u32 3, %s33
        %s546 = smul.u32 16, %s32
        %s547 = smul.u32 3, %s33
        %s548 = smul.u32 16, %s32
        %s549 = smul.u32 3, %s33
        %v550 = vld [vmem:[%s502] sm:$0xff]
        %v551 = vld [vmem:[%s502 + $0x8] sm:$0xff]
        %v552 = vld [vmem:[%s502 + $0x10] sm:$0xff]
        %v553 = vld [vmem:[%s502 + $0x18] sm:$0xff]
        %v554 = vld [vmem:[%s502 + $0x20] sm:$0xff]
        %v555 = vld [vmem:[%s502 + $0x28] sm:$0xff]
        %v556 = vld [vmem:[%s502 + $0x30] sm:$0xff]
        %v557 = vld [vmem:[%s502 + $0x38] sm:$0xff]
        %v558 = vld [vmem:[%s502 + $0x40] sm:$0xff]
        %v559 = vld [vmem:[%s502 + $0x48] sm:$0xff]
        %v560 = vld [vmem:[%s502 + $0x50] sm:$0xff]
        %v561 = vld [vmem:[%s502 + $0x58] sm:$0xff]
        %v562 = vld [vmem:[%s502 + $0x60] sm:$0xff]
        %v563 = vld [vmem:[%s502 + $0x68] sm:$0xff]
        %v564 = vld [vmem:[%s502 + $0x70] sm:$0xff]
        %v565 = vld [vmem:[%s502 + $0x78] sm:$0xff]
        %v566 = vld [vmem:[%s508] sm:$0xff]
        %v567 = vld [vmem:[%s508 + $0x8] sm:$0xff]
        %v568 = vld [vmem:[%s508 + $0x10] sm:$0xff]
        %v569 = vld [vmem:[%s508 + $0x18] sm:$0xff]
        %v570 = vld [vmem:[%s508 + $0x20] sm:$0xff]
        %v571 = vld [vmem:[%s508 + $0x28] sm:$0xff]
        %v572 = vld [vmem:[%s508 + $0x30] sm:$0xff]
        %v573 = vld [vmem:[%s508 + $0x38] sm:$0xff]
        %v574 = vld [vmem:[%s508 + $0x40] sm:$0xff]
        %v575 = vld [vmem:[%s508 + $0x48] sm:$0xff]
        %v576 = vld [vmem:[%s508 + $0x50] sm:$0xff]
        %v577 = vld [vmem:[%s508 + $0x58] sm:$0xff]
        %v578 = vld [vmem:[%s508 + $0x60] sm:$0xff]
        %v579 = vld [vmem:[%s508 + $0x68] sm:$0xff]
        %v580 = vld [vmem:[%s508 + $0x70] sm:$0xff]
        %v581 = vld [vmem:[%s508 + $0x78] sm:$0xff]
        %v582 = vld [vmem:[%s508 + $0x80] sm:$0xff]
        %v583 = vld [vmem:[%s508 + $0x88] sm:$0xff]
        %v584 = vld [vmem:[%s508 + $0x90] sm:$0xff]
        %v585 = vld [vmem:[%s508 + $0x98] sm:$0xff]
        %v586 = vld [vmem:[%s508 + $0xa0] sm:$0xff]
        %v587 = vld [vmem:[%s508 + $0xa8] sm:$0xff]
        %v588 = vld [vmem:[%s508 + $0xb0] sm:$0xff]
        %v589 = vld [vmem:[%s508 + $0xb8] sm:$0xff]
        %v590 = vld [vmem:[%s508 + $0xc0] sm:$0xff]
        %v591 = vld [vmem:[%s508 + $0xc8] sm:$0xff]
        %v592 = vld [vmem:[%s508 + $0xd0] sm:$0xff]
        %v593 = vld [vmem:[%s508 + $0xd8] sm:$0xff]
        %v594 = vld [vmem:[%s508 + $0xe0] sm:$0xff]
        %v595 = vld [vmem:[%s508 + $0xe8] sm:$0xff]
        %v596 = vld [vmem:[%s508 + $0xf0] sm:$0xff]
        %v597 = vld [vmem:[%s508 + $0xf8] sm:$0xff]
        %v598 = vld [vmem:[%s508 + $0x100] sm:$0xff]
        %v599 = vld [vmem:[%s508 + $0x108] sm:$0xff]
        %v600 = vld [vmem:[%s508 + $0x110] sm:$0xff]
        %v601 = vld [vmem:[%s508 + $0x118] sm:$0xff]
        %v602 = vld [vmem:[%s508 + $0x120] sm:$0xff]
        %v603 = vld [vmem:[%s508 + $0x128] sm:$0xff]
        %v604 = vld [vmem:[%s508 + $0x130] sm:$0xff]
        %v605 = vld [vmem:[%s508 + $0x138] sm:$0xff]
        %v606 = vld [vmem:[%s508 + $0x140] sm:$0xff]
        %v607 = vld [vmem:[%s508 + $0x148] sm:$0xff]
        %v608 = vld [vmem:[%s508 + $0x150] sm:$0xff]
        %v609 = vld [vmem:[%s508 + $0x158] sm:$0xff]
        %v610 = vld [vmem:[%s508 + $0x160] sm:$0xff]
        %v611 = vld [vmem:[%s508 + $0x168] sm:$0xff]
        %v612 = vld [vmem:[%s508 + $0x170] sm:$0xff]
        %v613 = vld [vmem:[%s508 + $0x178] sm:$0xff]
        %v614 = vld [vmem:[%s526] sm:$0xff]
        %v615 = vld [vmem:[%s526 + $0x8] sm:$0xff]
        %v616 = vld [vmem:[%s526 + $0x10] sm:$0xff]
        %v617 = vld [vmem:[%s526 + $0x18] sm:$0xff]
        %v618 = vld [vmem:[%s526 + $0x20] sm:$0xff]
        %v619 = vld [vmem:[%s526 + $0x28] sm:$0xff]
        %v620 = vld [vmem:[%s526 + $0x30] sm:$0xff]
        %v621 = vld [vmem:[%s526 + $0x38] sm:$0xff]
        %v622 = vld [vmem:[%s526 + $0x40] sm:$0xff]
        %v623 = vld [vmem:[%s526 + $0x48] sm:$0xff]
        %v624 = vld [vmem:[%s526 + $0x50] sm:$0xff]
        %v625 = vld [vmem:[%s526 + $0x58] sm:$0xff]
        %v626 = vld [vmem:[%s526 + $0x60] sm:$0xff]
        %v627 = vld [vmem:[%s526 + $0x68] sm:$0xff]
        %v628 = vld [vmem:[%s526 + $0x70] sm:$0xff]
        %v629 = vld [vmem:[%s526 + $0x78] sm:$0xff]
        %v630 = vld [vmem:[%s531] sm:$0x7]
        %vm631 = vcmask 130048
        %v633 = vsel %vm631, %v550, 0
        %v636 = vsel %vm631, %v551, 0
        %v639 = vsel %vm631, %v552, 0
        %v642 = vsel %vm631, %v553, 0
        %v645 = vsel %vm631, %v554, 0
        %v648 = vsel %vm631, %v555, 0
        %v651 = vsel %vm631, %v556, 0
        %v654 = vsel %vm631, %v557, 0
        %v657 = vsel %vm631, %v558, 0
        %v660 = vsel %vm631, %v559, 0
        %v663 = vsel %vm631, %v560, 0
        %v666 = vsel %vm631, %v561, 0
        %v669 = vsel %vm631, %v562, 0
        %v672 = vsel %vm631, %v563, 0
        %v675 = vsel %vm631, %v564, 0
        %v678 = vsel %vm631, %v565, 0
        %v681 = vsel %vm631, %v566, 0
        %v684 = vsel %vm631, %v567, 0
        %v687 = vsel %vm631, %v568, 0
        %v690 = vsel %vm631, %v569, 0
        %v693 = vsel %vm631, %v570, 0
        %v696 = vsel %vm631, %v571, 0
        %v699 = vsel %vm631, %v572, 0
        %v702 = vsel %vm631, %v573, 0
        %v705 = vsel %vm631, %v574, 0
        %v708 = vsel %vm631, %v575, 0
        %v711 = vsel %vm631, %v576, 0
        %v714 = vsel %vm631, %v577, 0
        %v717 = vsel %vm631, %v578, 0
        %v720 = vsel %vm631, %v579, 0
        %v723 = vsel %vm631, %v580, 0
        %v726 = vsel %vm631, %v581, 0
        %v729 = vsel %vm631, %v582, 0
        %v732 = vsel %vm631, %v583, 0
        %v735 = vsel %vm631, %v584, 0
        %v738 = vsel %vm631, %v585, 0
        %v741 = vsel %vm631, %v586, 0
        %v744 = vsel %vm631, %v587, 0
        %v747 = vsel %vm631, %v588, 0
        %v750 = vsel %vm631, %v589, 0
        %v753 = vsel %vm631, %v590, 0
        %v756 = vsel %vm631, %v591, 0
        %v759 = vsel %vm631, %v592, 0
        %v762 = vsel %vm631, %v593, 0
        %v765 = vsel %vm631, %v594, 0
        %v768 = vsel %vm631, %v595, 0
        %v771 = vsel %vm631, %v596, 0
        %v774 = vsel %vm631, %v597, 0
        %v777 = vsel %vm631, %v598, 0
        %v780 = vsel %vm631, %v599, 0
        %v783 = vsel %vm631, %v600, 0
        %v786 = vsel %vm631, %v601, 0
        %v789 = vsel %vm631, %v602, 0
        %v792 = vsel %vm631, %v603, 0
        %v795 = vsel %vm631, %v604, 0
        %v798 = vsel %vm631, %v605, 0
        %v801 = vsel %vm631, %v606, 0
        %v804 = vsel %vm631, %v607, 0
        %v807 = vsel %vm631, %v608, 0
        %v810 = vsel %vm631, %v609, 0
        %v813 = vsel %vm631, %v610, 0
        %v816 = vsel %vm631, %v611, 0
        %v819 = vsel %vm631, %v612, 0
        %v822 = vsel %vm631, %v613, 0
        %824 = vmatprep.subr.mxu0 0.0
        %825 = vmatpush1.xpose.msra.mxu0 %v681
        %826 = vmatprep.subr.mxu0 0.0
        %827 = vmatpush1.xpose.msra.mxu0 %v684
        %828 = vmatprep.subr.mxu0 0.0
        %829 = vmatpush1.xpose.msra.mxu0 %v687
        %830 = vmatprep.subr.mxu0 0.0
        %831 = vmatpush1.xpose.msra.mxu0 %v690
        %832 = vmatprep.subr.mxu0 0.0
        %833 = vmatpush1.xpose.msra.mxu0 %v693
        %834 = vmatprep.subr.mxu0 0.0
        %835 = vmatpush1.xpose.msra.mxu0 %v696
        %836 = vmatprep.subr.mxu0 0.0
        %837 = vmatpush1.xpose.msra.mxu0 %v699
        %838 = vmatprep.subr.mxu0 0.0
        %839 = vmatpush1.xpose.msra.mxu0 %v702
        %840 = vmatprep.subr.mxu0 0.0
        %841 = vmatpush1.xpose.msra.mxu0 %v705
        %842 = vmatprep.subr.mxu0 0.0
        %843 = vmatpush1.xpose.msra.mxu0 %v708
        %844 = vmatprep.subr.mxu0 0.0
        %845 = vmatpush1.xpose.msra.mxu0 %v711
        %846 = vmatprep.subr.mxu0 0.0
        %847 = vmatpush1.xpose.msra.mxu0 %v714
        %848 = vmatprep.subr.mxu0 0.0
        %849 = vmatpush1.xpose.msra.mxu0 %v717
        %850 = vmatprep.subr.mxu0 0.0
        %851 = vmatpush1.xpose.msra.mxu0 %v720
        %852 = vmatprep.subr.mxu0 0.0
        %853 = vmatpush1.xpose.msra.mxu0 %v723
        %854 = vmatprep.subr.mxu0 0.0
        %855 = vmatpush1.xpose.msra.mxu0 %v726
        %856 = vmatprep.subr.mxu0 0.0
        %857 = vmatpush1.xpose.msra.mxu0 %v729
        %858 = vmatprep.subr.mxu0 0.0
        %859 = vmatpush1.xpose.msra.mxu0 %v732
        %860 = vmatprep.subr.mxu0 0.0
        %861 = vmatpush1.xpose.msra.mxu0 %v735
        %862 = vmatprep.subr.mxu0 0.0
        %863 = vmatpush1.xpose.msra.mxu0 %v738
        %864 = vmatprep.subr.mxu0 0.0
        %865 = vmatpush1.xpose.msra.mxu0 %v741
        %866 = vmatprep.subr.mxu0 0.0
        %867 = vmatpush1.xpose.msra.mxu0 %v744
        %868 = vmatprep.subr.mxu0 0.0
        %869 = vmatpush1.xpose.msra.mxu0 %v747
        %870 = vmatprep.subr.mxu0 0.0
        %871 = vmatpush1.xpose.msra.mxu0 %v750
        %872 = vmatprep.subr.mxu0 0.0
        %873 = vmatpush1.xpose.msra.mxu0 %v753
        %874 = vmatprep.subr.mxu0 0.0
        %875 = vmatpush1.xpose.msra.mxu0 %v756
        %876 = vmatprep.subr.mxu0 0.0
        %877 = vmatpush1.xpose.msra.mxu0 %v759
        %878 = vmatprep.subr.mxu0 0.0
        %879 = vmatpush1.xpose.msra.mxu0 %v762
        %880 = vmatprep.subr.mxu0 0.0
        %881 = vmatpush1.xpose.msra.mxu0 %v765
        %882 = vmatprep.subr.mxu0 0.0
        %883 = vmatpush1.xpose.msra.mxu0 %v768
        %884 = vmatprep.subr.mxu0 0.0
        %885 = vmatpush1.xpose.msra.mxu0 %v771
        %886 = vmatprep.subr.mxu0 0.0
        %887 = vmatpush1.xpose.msra.mxu0 %v774
        %888 = vmatprep.mubr.f32.mxu0 0.0
        %889 = vmatmul.mubr.f32.gmra.mrb[0].mxu0 %v633
        %v890 = vpop.f32.mrb[0].mxu0
        %v891 = vadd.f32 0.0, %v890
        %v892 = vpop.f32.mrb[0].mxu0
        %v893 = vadd.f32 0.0, %v892
        %894 = vmatprep.mubr.f32.mxu0 0.0
        %895 = vmatmul.mubr.f32.gmra.mrb[0].mxu0 %v636
        %v896 = vpop.f32.mrb[0].mxu0
        %v897 = vadd.f32 0.0, %v896
        %v898 = vpop.f32.mrb[0].mxu0
        %v899 = vadd.f32 0.0, %v898
        %900 = vmatprep.mubr.f32.mxu0 0.0
        %901 = vmatmul.mubr.f32.gmra.mrb[0].mxu0 %v639
        %v902 = vpop.f32.mrb[0].mxu0
        %v903 = vadd.f32 0.0, %v902
        %v904 = vpop.f32.mrb[0].mxu0
        %v905 = vadd.f32 0.0, %v904
        %906 = vmatprep.mubr.f32.mxu0 0.0
        %907 = vmatmul.mubr.f32.gmra.mrb[0].mxu0 %v642
        %v908 = vpop.f32.mrb[0].mxu0
        %v909 = vadd.f32 0.0, %v908
        %v910 = vpop.f32.mrb[0].mxu0
        %v911 = vadd.f32 0.0, %v910
        %912 = vmatprep.mubr.f32.mxu0 0.0
        %913 = vmatmul.mubr.f32.gmra.mrb[0].mxu0 %v645
        %v914 = vpop.f32.mrb[0].mxu0
        %v915 = vadd.f32 0.0, %v914
        %v916 = vpop.f32.mrb[0].mxu0
        %v917 = vadd.f32 0.0, %v916
        %918 = vmatprep.mubr.f32.mxu0 0.0
        %919 = vmatmul.mubr.f32.gmra.mrb[0].mxu0 %v648
        %v920 = vpop.f32.mrb[0].mxu0
        %v921 = vadd.f32 0.0, %v920
        %v922 = vpop.f32.mrb[0].mxu0
        %v923 = vadd.f32 0.0, %v922
        %924 = vmatprep.mubr.f32.mxu0 0.0
        %925 = vmatmul.mubr.f32.gmra.mrb[0].mxu0 %v651
        %v926 = vpop.f32.mrb[0].mxu0
        %v927 = vadd.f32 0.0, %v926
        %v928 = vpop.f32.mrb[0].mxu0
        %v929 = vadd.f32 0.0, %v928
        %930 = vmatprep.mubr.f32.mxu0 0.0
        %931 = vmatmul.mubr.f32.gmra.mrb[0].mxu0 %v654
        %v932 = vpop.f32.mrb[0].mxu0
        %v933 = vadd.f32 0.0, %v932
        %v934 = vpop.f32.mrb[0].mxu0
        %v935 = vadd.f32 0.0, %v934
        %936 = vmatprep.mubr.f32.mxu0 0.0
        %937 = vmatmul.mubr.f32.gmra.mrb[0].mxu0 %v657
        %v938 = vpop.f32.mrb[0].mxu0
        %v939 = vadd.f32 0.0, %v938
        %v940 = vpop.f32.mrb[0].mxu0
        %v941 = vadd.f32 0.0, %v940
        %942 = vmatprep.mubr.f32.mxu0 0.0
        %943 = vmatmul.mubr.f32.gmra.mrb[0].mxu0 %v660
        %v944 = vpop.f32.mrb[0].mxu0
        %v945 = vadd.f32 0.0, %v944
        %v946 = vpop.f32.mrb[0].mxu0
        %v947 = vadd.f32 0.0, %v946
        %948 = vmatprep.mubr.f32.mxu0 0.0
        %949 = vmatmul.mubr.f32.gmra.mrb[0].mxu0 %v663
        %v950 = vpop.f32.mrb[0].mxu0
        %v951 = vadd.f32 0.0, %v950
        %v952 = vpop.f32.mrb[0].mxu0
        %v953 = vadd.f32 0.0, %v952
        %954 = vmatprep.mubr.f32.mxu0 0.0
        %955 = vmatmul.mubr.f32.gmra.mrb[0].mxu0 %v666
        %v956 = vpop.f32.mrb[0].mxu0
        %v957 = vadd.f32 0.0, %v956
        %v958 = vpop.f32.mrb[0].mxu0
        %v959 = vadd.f32 0.0, %v958
        %960 = vmatprep.mubr.f32.mxu0 0.0
        %961 = vmatmul.mubr.f32.gmra.mrb[0].mxu0 %v669
        %v962 = vpop.f32.mrb[0].mxu0
        %v963 = vadd.f32 0.0, %v962
        %v964 = vpop.f32.mrb[0].mxu0
        %v965 = vadd.f32 0.0, %v964
        %966 = vmatprep.mubr.f32.mxu0 0.0
        %967 = vmatmul.mubr.f32.gmra.mrb[0].mxu0 %v672
        %v968 = vpop.f32.mrb[0].mxu0
        %v969 = vadd.f32 0.0, %v968
        %v970 = vpop.f32.mrb[0].mxu0
        %v971 = vadd.f32 0.0, %v970
        %972 = vmatprep.mubr.f32.mxu0 0.0
        %973 = vmatmul.mubr.f32.gmra.mrb[0].mxu0 %v675
        %v974 = vpop.f32.mrb[0].mxu0
        %v975 = vadd.f32 0.0, %v974
        %v976 = vpop.f32.mrb[0].mxu0
        %v977 = vadd.f32 0.0, %v976
        %978 = vmatprep.mubr.f32.mxu0 0.0
        %979 = vmatmul.mubr.f32.gmra.mrb[0].mxu0 %v678
        %v980 = vpop.f32.mrb[0].mxu0
        %v981 = vadd.f32 0.0, %v980
        %v982 = vpop.f32.mrb[0].mxu0
        %v983 = vadd.f32 0.0, %v982
        %984 = vdwg.mxu0
        %985 = vmatprep.subr.mxu0 0.0
        %986 = vmatpush1.xpose.msra.mxu0 %v777
        %987 = vmatprep.subr.mxu0 0.0
        %988 = vmatpush1.xpose.msra.mxu0 %v780
        %989 = vmatprep.subr.mxu0 0.0
        %990 = vmatpush1.xpose.msra.mxu0 %v783
        %991 = vmatprep.subr.mxu0 0.0
        %992 = vmatpush1.xpose.msra.mxu0 %v786
        %993 = vmatprep.subr.mxu0 0.0
        %994 = vmatpush1.xpose.msra.mxu0 %v789
        %995 = vmatprep.subr.mxu0 0.0
        %996 = vmatpush1.xpose.msra.mxu0 %v792
        %997 = vmatprep.subr.mxu0 0.0
        %998 = vmatpush1.xpose.msra.mxu0 %v795
        %999 = vmatprep.subr.mxu0 0.0
        %1000 = vmatpush1.xpose.msra.mxu0 %v798
        %1001 = vmatprep.subr.mxu0 0.0
        %1002 = vmatpush1.xpose.msra.mxu0 %v801
        %1003 = vmatprep.subr.mxu0 0.0
        %1004 = vmatpush1.xpose.msra.mxu0 %v804
        %1005 = vmatprep.subr.mxu0 0.0
        %1006 = vmatpush1.xpose.msra.mxu0 %v807
        %1007 = vmatprep.subr.mxu0 0.0
        %1008 = vmatpush1.xpose.msra.mxu0 %v810
        %1009 = vmatprep.subr.mxu0 0.0
        %1010 = vmatpush1.xpose.msra.mxu0 %v813
        %1011 = vmatprep.subr.mxu0 0.0
        %1012 = vmatpush1.xpose.msra.mxu0 %v816
        %1013 = vmatprep.subr.mxu0 0.0
        %1014 = vmatpush1.xpose.msra.mxu0 %v819
        %1015 = vmatprep.subr.mxu0 0.0
        %1016 = vmatpush1.xpose.msra.mxu0 %v822
        %1017 = vmatprep.subr.mxu0 0.0
        %1018 = vmatpush1.xpose.msra.mxu0 0.0
        %1019 = vmatprep.subr.mxu0 0.0
        %1020 = vmatpush1.xpose.msra.mxu0 0.0
        %1021 = vmatprep.subr.mxu0 0.0
        %1022 = vmatpush1.xpose.msra.mxu0 0.0
        %1023 = vmatprep.subr.mxu0 0.0
        %1024 = vmatpush1.xpose.msra.mxu0 0.0
        %1025 = vmatprep.subr.mxu0 0.0
        %1026 = vmatpush1.xpose.msra.mxu0 0.0
        %1027 = vmatprep.subr.mxu0 0.0
        %1028 = vmatpush1.xpose.msra.mxu0 0.0
        %1029 = vmatprep.subr.mxu0 0.0
        %1030 = vmatpush1.xpose.msra.mxu0 0.0
        %1031 = vmatprep.subr.mxu0 0.0
        %1032 = vmatpush1.xpose.msra.mxu0 0.0
        %1033 = vmatprep.subr.mxu0 0.0
        %1034 = vmatpush1.xpose.msra.mxu0 0.0
        %1035 = vmatprep.subr.mxu0 0.0
        %1036 = vmatpush1.xpose.msra.mxu0 0.0
        %1037 = vmatprep.subr.mxu0 0.0
        %1038 = vmatpush1.xpose.msra.mxu0 0.0
        %1039 = vmatprep.subr.mxu0 0.0
        %1040 = vmatpush1.xpose.msra.mxu0 0.0
        %1041 = vmatprep.subr.mxu0 0.0
        %1042 = vmatpush1.xpose.msra.mxu0 0.0
        %1043 = vmatprep.subr.mxu0 0.0
        %1044 = vmatpush1.xpose.msra.mxu0 0.0
        %1045 = vmatprep.subr.mxu0 0.0
        %1046 = vmatpush1.xpose.msra.mxu0 0.0
        %1047 = vmatprep.subr.mxu0 0.0
        %1048 = vmatpush1.xpose.msra.mxu0 0.0
        %1049 = vmatprep.mubr.f32.mxu0 0.0
        %1050 = vmatmul.mubr.f32.gmra.mrb[0].mxu0 %v633
        %v1051 = vpop.f32.mrb[0].mxu0
        %v1052 = vadd.f32 0.0, %v1051
        %v1053 = vpop.f32.mrb[0].mxu0
        %1054 = vmatprep.mubr.f32.mxu0 0.0
        %1055 = vmatmul.mubr.f32.gmra.mrb[0].mxu0 %v636
        %v1056 = vpop.f32.mrb[0].mxu0
        %v1057 = vadd.f32 0.0, %v1056
        %v1058 = vpop.f32.mrb[0].mxu0
        %1059 = vmatprep.mubr.f32.mxu0 0.0
        %1060 = vmatmul.mubr.f32.gmra.mrb[0].mxu0 %v639
        %v1061 = vpop.f32.mrb[0].mxu0
        %v1062 = vadd.f32 0.0, %v1061
        %v1063 = vpop.f32.mrb[0].mxu0
        %1064 = vmatprep.mubr.f32.mxu0 0.0
        %1065 = vmatmul.mubr.f32.gmra.mrb[0].mxu0 %v642
        %v1066 = vpop.f32.mrb[0].mxu0
        %v1067 = vadd.f32 0.0, %v1066
        %v1068 = vpop.f32.mrb[0].mxu0
        %1069 = vmatprep.mubr.f32.mxu0 0.0
        %1070 = vmatmul.mubr.f32.gmra.mrb[0].mxu0 %v645
        %v1071 = vpop.f32.mrb[0].mxu0
        %v1072 = vadd.f32 0.0, %v1071
        %v1073 = vpop.f32.mrb[0].mxu0
        %1074 = vmatprep.mubr.f32.mxu0 0.0
        %1075 = vmatmul.mubr.f32.gmra.mrb[0].mxu0 %v648
        %v1076 = vpop.f32.mrb[0].mxu0
        %v1077 = vadd.f32 0.0, %v1076
        %v1078 = vpop.f32.mrb[0].mxu0
        %1079 = vmatprep.mubr.f32.mxu0 0.0
        %1080 = vmatmul.mubr.f32.gmra.mrb[0].mxu0 %v651
        %v1081 = vpop.f32.mrb[0].mxu0
        %v1082 = vadd.f32 0.0, %v1081
        %v1083 = vpop.f32.mrb[0].mxu0
        %1084 = vmatprep.mubr.f32.mxu0 0.0
        %1085 = vmatmul.mubr.f32.gmra.mrb[0].mxu0 %v654
        %v1086 = vpop.f32.mrb[0].mxu0
        %v1087 = vadd.f32 0.0, %v1086
        %v1088 = vpop.f32.mrb[0].mxu0
        %1089 = vmatprep.mubr.f32.mxu0 0.0
        %1090 = vmatmul.mubr.f32.gmra.mrb[0].mxu0 %v657
        %v1091 = vpop.f32.mrb[0].mxu0
        %v1092 = vadd.f32 0.0, %v1091
        %v1093 = vpop.f32.mrb[0].mxu0
        %1094 = vmatprep.mubr.f32.mxu0 0.0
        %1095 = vmatmul.mubr.f32.gmra.mrb[0].mxu0 %v660
        %v1096 = vpop.f32.mrb[0].mxu0
        %v1097 = vadd.f32 0.0, %v1096
        %v1098 = vpop.f32.mrb[0].mxu0
        %1099 = vmatprep.mubr.f32.mxu0 0.0
        %1100 = vmatmul.mubr.f32.gmra.mrb[0].mxu0 %v663
        %v1101 = vpop.f32.mrb[0].mxu0
        %v1102 = vadd.f32 0.0, %v1101
        %v1103 = vpop.f32.mrb[0].mxu0
        %1104 = vmatprep.mubr.f32.mxu0 0.0
        %1105 = vmatmul.mubr.f32.gmra.mrb[0].mxu0 %v666
        %v1106 = vpop.f32.mrb[0].mxu0
        %v1107 = vadd.f32 0.0, %v1106
        %v1108 = vpop.f32.mrb[0].mxu0
        %1109 = vmatprep.mubr.f32.mxu0 0.0
        %1110 = vmatmul.mubr.f32.gmra.mrb[0].mxu0 %v669
        %v1111 = vpop.f32.mrb[0].mxu0
        %v1112 = vadd.f32 0.0, %v1111
        %v1113 = vpop.f32.mrb[0].mxu0
        %1114 = vmatprep.mubr.f32.mxu0 0.0
        %1115 = vmatmul.mubr.f32.gmra.mrb[0].mxu0 %v672
        %v1116 = vpop.f32.mrb[0].mxu0
        %v1117 = vadd.f32 0.0, %v1116
        %v1118 = vpop.f32.mrb[0].mxu0
        %1119 = vmatprep.mubr.f32.mxu0 0.0
        %1120 = vmatmul.mubr.f32.gmra.mrb[0].mxu0 %v675
        %v1121 = vpop.f32.mrb[0].mxu0
        %v1122 = vadd.f32 0.0, %v1121
        %v1123 = vpop.f32.mrb[0].mxu0
        %1124 = vmatprep.mubr.f32.mxu0 0.0
        %1125 = vmatmul.mubr.f32.gmra.mrb[0].mxu0 %v678
        %v1126 = vpop.f32.mrb[0].mxu0
        %v1127 = vadd.f32 0.0, %v1126
        %v1128 = vpop.f32.mrb[0].mxu0
        %1129 = vdwg.mxu0
        %1131 = vset.pattern.permute.xlu0 0
        %1132 = vperm.xlu0 %1131, %v614
        %v1133 = vpop.permute.xlu0 %1132
        %1136 = vset.pattern.permute.xlu0 0
        %1137 = vperm.xlu0 %1136, %v615
        %v1138 = vpop.permute.xlu0 %1137
        %1141 = vset.pattern.permute.xlu0 0
        %1142 = vperm.xlu0 %1141, %v616
        %v1143 = vpop.permute.xlu0 %1142
        %1146 = vset.pattern.permute.xlu0 0
        %1147 = vperm.xlu0 %1146, %v617
        %v1148 = vpop.permute.xlu0 %1147
        %1151 = vset.pattern.permute.xlu0 0
        %1152 = vperm.xlu0 %1151, %v618
        %v1153 = vpop.permute.xlu0 %1152
        %1156 = vset.pattern.permute.xlu0 0
        %1157 = vperm.xlu0 %1156, %v619
        %v1158 = vpop.permute.xlu0 %1157
        %1161 = vset.pattern.permute.xlu0 0
        %1162 = vperm.xlu0 %1161, %v620
        %v1163 = vpop.permute.xlu0 %1162
        %1166 = vset.pattern.permute.xlu0 0
        %1167 = vperm.xlu0 %1166, %v621
        %v1168 = vpop.permute.xlu0 %1167
        %1171 = vset.pattern.permute.xlu0 0
        %1172 = vperm.xlu0 %1171, %v622
        %v1173 = vpop.permute.xlu0 %1172
        %1176 = vset.pattern.permute.xlu0 0
        %1177 = vperm.xlu0 %1176, %v623
        %v1178 = vpop.permute.xlu0 %1177
        %1181 = vset.pattern.permute.xlu0 0
        %1182 = vperm.xlu0 %1181, %v624
        %v1183 = vpop.permute.xlu0 %1182
        %1186 = vset.pattern.permute.xlu0 0
        %1187 = vperm.xlu0 %1186, %v625
        %v1188 = vpop.permute.xlu0 %1187
        %1191 = vset.pattern.permute.xlu0 0
        %1192 = vperm.xlu0 %1191, %v626
        %v1193 = vpop.permute.xlu0 %1192
        %1196 = vset.pattern.permute.xlu0 0
        %1197 = vperm.xlu0 %1196, %v627
        %v1198 = vpop.permute.xlu0 %1197
        %1201 = vset.pattern.permute.xlu0 0
        %1202 = vperm.xlu0 %1201, %v628
        %v1203 = vpop.permute.xlu0 %1202
        %1206 = vset.pattern.permute.xlu0 0
        %1207 = vperm.xlu0 %1206, %v629
        %v1208 = vpop.permute.xlu0 %1207
        %v1211 = vlaneseq
        %v1212 = vshrl.u32 %v1211, 7
        %v1213 = vsub.s32 0, %v1212
        %v1214 = vrot.slane %v630, %v1213
        %v1215 = vlaneseq
        %v1216 = vshrl.u32 %v1215, 7
        %v1217 = vsub.s32 1, %v1216
        %v1218 = vrot.slane %v630, %v1217
        %v1219 = vlaneseq
        %v1220 = vshrl.u32 %v1219, 7
        %v1221 = vsub.s32 2, %v1220
        %v1222 = vrot.slane %v630, %v1221
        %v1226 = vadd.f32 %v1133, %v1214
        %v1227 = vadd.f32 %v1133, %v1218
        %v1228 = vadd.f32 %v1133, %v1222
        %v1229 = vadd.f32 %v1138, %v1214
        %v1230 = vadd.f32 %v1138, %v1218
        %v1231 = vadd.f32 %v1138, %v1222
        %v1232 = vadd.f32 %v1143, %v1214
        %v1233 = vadd.f32 %v1143, %v1218
        %v1234 = vadd.f32 %v1143, %v1222
        %v1235 = vadd.f32 %v1148, %v1214
        %v1236 = vadd.f32 %v1148, %v1218
        %v1237 = vadd.f32 %v1148, %v1222
        %v1238 = vadd.f32 %v1153, %v1214
        %v1239 = vadd.f32 %v1153, %v1218
        %v1240 = vadd.f32 %v1153, %v1222
        %v1241 = vadd.f32 %v1158, %v1214
        %v1242 = vadd.f32 %v1158, %v1218
        %v1243 = vadd.f32 %v1158, %v1222
        %v1244 = vadd.f32 %v1163, %v1214
        %v1245 = vadd.f32 %v1163, %v1218
        %v1246 = vadd.f32 %v1163, %v1222
        %v1247 = vadd.f32 %v1168, %v1214
        %v1248 = vadd.f32 %v1168, %v1218
        %v1249 = vadd.f32 %v1168, %v1222
        %v1250 = vadd.f32 %v1173, %v1214
        %v1251 = vadd.f32 %v1173, %v1218
        %v1252 = vadd.f32 %v1173, %v1222
        %v1253 = vadd.f32 %v1178, %v1214
        %v1254 = vadd.f32 %v1178, %v1218
        %v1255 = vadd.f32 %v1178, %v1222
        %v1256 = vadd.f32 %v1183, %v1214
        %v1257 = vadd.f32 %v1183, %v1218
        %v1258 = vadd.f32 %v1183, %v1222
        %v1259 = vadd.f32 %v1188, %v1214
        %v1260 = vadd.f32 %v1188, %v1218
        %v1261 = vadd.f32 %v1188, %v1222
        %v1262 = vadd.f32 %v1193, %v1214
        %v1263 = vadd.f32 %v1193, %v1218
        %v1264 = vadd.f32 %v1193, %v1222
        %v1265 = vadd.f32 %v1198, %v1214
        %v1266 = vadd.f32 %v1198, %v1218
        %v1267 = vadd.f32 %v1198, %v1222
        %v1268 = vadd.f32 %v1203, %v1214
        %v1269 = vadd.f32 %v1203, %v1218
        %v1270 = vadd.f32 %v1203, %v1222
        %v1271 = vadd.f32 %v1208, %v1214
        %v1272 = vadd.f32 %v1208, %v1218
        %v1273 = vadd.f32 %v1208, %v1222
        %v1274 = vadd.f32 %v1226, %v891
        %v1275 = vadd.f32 %v1227, %v893
        %v1276 = vadd.f32 %v1228, %v1052
        %v1277 = vadd.f32 %v1229, %v897
        %v1278 = vadd.f32 %v1230, %v899
        %v1279 = vadd.f32 %v1231, %v1057
        %v1280 = vadd.f32 %v1232, %v903
        %v1281 = vadd.f32 %v1233, %v905
        %v1282 = vadd.f32 %v1234, %v1062
        %v1283 = vadd.f32 %v1235, %v909
        %v1284 = vadd.f32 %v1236, %v911
        %v1285 = vadd.f32 %v1237, %v1067
        %v1286 = vadd.f32 %v1238, %v915
        %v1287 = vadd.f32 %v1239, %v917
        %v1288 = vadd.f32 %v1240, %v1072
        %v1289 = vadd.f32 %v1241, %v921
        %v1290 = vadd.f32 %v1242, %v923
        %v1291 = vadd.f32 %v1243, %v1077
        %v1292 = vadd.f32 %v1244, %v927
        %v1293 = vadd.f32 %v1245, %v929
        %v1294 = vadd.f32 %v1246, %v1082
        %v1295 = vadd.f32 %v1247, %v933
        %v1296 = vadd.f32 %v1248, %v935
        %v1297 = vadd.f32 %v1249, %v1087
        %v1298 = vadd.f32 %v1250, %v939
        %v1299 = vadd.f32 %v1251, %v941
        %v1300 = vadd.f32 %v1252, %v1092
        %v1301 = vadd.f32 %v1253, %v945
        %v1302 = vadd.f32 %v1254, %v947
        %v1303 = vadd.f32 %v1255, %v1097
        %v1304 = vadd.f32 %v1256, %v951
        %v1305 = vadd.f32 %v1257, %v953
        %v1306 = vadd.f32 %v1258, %v1102
        %v1307 = vadd.f32 %v1259, %v957
        %v1308 = vadd.f32 %v1260, %v959
        %v1309 = vadd.f32 %v1261, %v1107
        %v1310 = vadd.f32 %v1262, %v963
        %v1311 = vadd.f32 %v1263, %v965
        %v1312 = vadd.f32 %v1264, %v1112
        %v1313 = vadd.f32 %v1265, %v969
        %v1314 = vadd.f32 %v1266, %v971
        %v1315 = vadd.f32 %v1267, %v1117
        %v1316 = vadd.f32 %v1268, %v975
        %v1317 = vadd.f32 %v1269, %v977
        %v1318 = vadd.f32 %v1270, %v1122
        %v1319 = vadd.f32 %v1271, %v981
        %v1320 = vadd.f32 %v1272, %v983
        %v1321 = vadd.f32 %v1273, %v1127
        %v1322 = vmin.f32 %v1274, 0.0
        %v1323 = vmin.f32 %v1275, 0.0
        %v1324 = vmin.f32 %v1276, 0.0
        %v1325 = vmin.f32 %v1277, 0.0
        %v1326 = vmin.f32 %v1278, 0.0
        %v1327 = vmin.f32 %v1279, 0.0
        %v1328 = vmin.f32 %v1280, 0.0
        %v1329 = vmin.f32 %v1281, 0.0
        %v1330 = vmin.f32 %v1282, 0.0
        %v1331 = vmin.f32 %v1283, 0.0
        %v1332 = vmin.f32 %v1284, 0.0
        %v1333 = vmin.f32 %v1285, 0.0
        %v1334 = vmin.f32 %v1286, 0.0
        %v1335 = vmin.f32 %v1287, 0.0
        %v1336 = vmin.f32 %v1288, 0.0
        %v1337 = vmin.f32 %v1289, 0.0
        %v1338 = vmin.f32 %v1290, 0.0
        %v1339 = vmin.f32 %v1291, 0.0
        %v1340 = vmin.f32 %v1292, 0.0
        %v1341 = vmin.f32 %v1293, 0.0
        %v1342 = vmin.f32 %v1294, 0.0
        %v1343 = vmin.f32 %v1295, 0.0
        %v1344 = vmin.f32 %v1296, 0.0
        %v1345 = vmin.f32 %v1297, 0.0
        %v1346 = vmin.f32 %v1298, 0.0
        %v1347 = vmin.f32 %v1299, 0.0
        %v1348 = vmin.f32 %v1300, 0.0
        %v1349 = vmin.f32 %v1301, 0.0
        %v1350 = vmin.f32 %v1302, 0.0
        %v1351 = vmin.f32 %v1303, 0.0
        %v1352 = vmin.f32 %v1304, 0.0
        %v1353 = vmin.f32 %v1305, 0.0
        %v1354 = vmin.f32 %v1306, 0.0
        %v1355 = vmin.f32 %v1307, 0.0
        %v1356 = vmin.f32 %v1308, 0.0
        %v1357 = vmin.f32 %v1309, 0.0
        %v1358 = vmin.f32 %v1310, 0.0
        %v1359 = vmin.f32 %v1311, 0.0
        %v1360 = vmin.f32 %v1312, 0.0
        %v1361 = vmin.f32 %v1313, 0.0
        %v1362 = vmin.f32 %v1314, 0.0
        %v1363 = vmin.f32 %v1315, 0.0
        %v1364 = vmin.f32 %v1316, 0.0
        %v1365 = vmin.f32 %v1317, 0.0
        %v1366 = vmin.f32 %v1318, 0.0
        %v1367 = vmin.f32 %v1319, 0.0
        %v1368 = vmin.f32 %v1320, 0.0
        %v1369 = vmin.f32 %v1321, 0.0
        %v1370 = vmul.f32 %v1322, 1.442695
        %v1371 = vpow.pop %v1370
        %v1372 = vmul.f32 %v1323, 1.442695
        %v1373 = vpow.pop %v1372
        %v1374 = vmul.f32 %v1324, 1.442695
        %v1375 = vpow.pop %v1374
        %v1376 = vmul.f32 %v1325, 1.442695
        %v1377 = vpow.pop %v1376
        %v1378 = vmul.f32 %v1326, 1.442695
        %v1379 = vpow.pop %v1378
        %v1380 = vmul.f32 %v1327, 1.442695
        %v1381 = vpow.pop %v1380
        %v1382 = vmul.f32 %v1328, 1.442695
        %v1383 = vpow.pop %v1382
        %v1384 = vmul.f32 %v1329, 1.442695
        %v1385 = vpow.pop %v1384
        %v1386 = vmul.f32 %v1330, 1.442695
        %v1387 = vpow.pop %v1386
        %v1388 = vmul.f32 %v1331, 1.442695
        %v1389 = vpow.pop %v1388
        %v1390 = vmul.f32 %v1332, 1.442695
        %v1391 = vpow.pop %v1390
        %v1392 = vmul.f32 %v1333, 1.442695
        %v1393 = vpow.pop %v1392
        %v1394 = vmul.f32 %v1334, 1.442695
        %v1395 = vpow.pop %v1394
        %v1396 = vmul.f32 %v1335, 1.442695
        %v1397 = vpow.pop %v1396
        %v1398 = vmul.f32 %v1336, 1.442695
        %v1399 = vpow.pop %v1398
        %v1400 = vmul.f32 %v1337, 1.442695
        %v1401 = vpow.pop %v1400
        %v1402 = vmul.f32 %v1338, 1.442695
        %v1403 = vpow.pop %v1402
        %v1404 = vmul.f32 %v1339, 1.442695
        %v1405 = vpow.pop %v1404
        %v1406 = vmul.f32 %v1340, 1.442695
        %v1407 = vpow.pop %v1406
        %v1408 = vmul.f32 %v1341, 1.442695
        %v1409 = vpow.pop %v1408
        %v1410 = vmul.f32 %v1342, 1.442695
        %v1411 = vpow.pop %v1410
        %v1412 = vmul.f32 %v1343, 1.442695
        %v1413 = vpow.pop %v1412
        %v1414 = vmul.f32 %v1344, 1.442695
        %v1415 = vpow.pop %v1414
        %v1416 = vmul.f32 %v1345, 1.442695
        %v1417 = vpow.pop %v1416
        %v1418 = vmul.f32 %v1346, 1.442695
        %v1419 = vpow.pop %v1418
        %v1420 = vmul.f32 %v1347, 1.442695
        %v1421 = vpow.pop %v1420
        %v1422 = vmul.f32 %v1348, 1.442695
        %v1423 = vpow.pop %v1422
        %v1424 = vmul.f32 %v1349, 1.442695
        %v1425 = vpow.pop %v1424
        %v1426 = vmul.f32 %v1350, 1.442695
        %v1427 = vpow.pop %v1426
        %v1428 = vmul.f32 %v1351, 1.442695
        %v1429 = vpow.pop %v1428
        %v1430 = vmul.f32 %v1352, 1.442695
        %v1431 = vpow.pop %v1430
        %v1432 = vmul.f32 %v1353, 1.442695
        %v1433 = vpow.pop %v1432
        %v1434 = vmul.f32 %v1354, 1.442695
        %v1435 = vpow.pop %v1434
        %v1436 = vmul.f32 %v1355, 1.442695
        %v1437 = vpow.pop %v1436
        %v1438 = vmul.f32 %v1356, 1.442695
        %v1439 = vpow.pop %v1438
        %v1440 = vmul.f32 %v1357, 1.442695
        %v1441 = vpow.pop %v1440
        %v1442 = vmul.f32 %v1358, 1.442695
        %v1443 = vpow.pop %v1442
        %v1444 = vmul.f32 %v1359, 1.442695
        %v1445 = vpow.pop %v1444
        %v1446 = vmul.f32 %v1360, 1.442695
        %v1447 = vpow.pop %v1446
        %v1448 = vmul.f32 %v1361, 1.442695
        %v1449 = vpow.pop %v1448
        %v1450 = vmul.f32 %v1362, 1.442695
        %v1451 = vpow.pop %v1450
        %v1452 = vmul.f32 %v1363, 1.442695
        %v1453 = vpow.pop %v1452
        %v1454 = vmul.f32 %v1364, 1.442695
        %v1455 = vpow.pop %v1454
        %v1456 = vmul.f32 %v1365, 1.442695
        %v1457 = vpow.pop %v1456
        %v1458 = vmul.f32 %v1366, 1.442695
        %v1459 = vpow.pop %v1458
        %v1460 = vmul.f32 %v1367, 1.442695
        %v1461 = vpow.pop %v1460
        %v1462 = vmul.f32 %v1368, 1.442695
        %v1463 = vpow.pop %v1462
        %v1464 = vmul.f32 %v1369, 1.442695
        %v1465 = vpow.pop %v1464
        %1466 = vst [vmem:[%s483] sm:$0xff] %v1371
        %1467 = vst [vmem:[%s483 + $0x8] sm:$0xff] %v1373
        %1468 = vst [vmem:[%s483 + $0x10] sm:$0xff] %v1375
        %1469 = vst [vmem:[%s483 + $0x18] sm:$0xff] %v1377
        %1470 = vst [vmem:[%s483 + $0x20] sm:$0xff] %v1379
        %1471 = vst [vmem:[%s483 + $0x28] sm:$0xff] %v1381
        %1472 = vst [vmem:[%s483 + $0x30] sm:$0xff] %v1383
        %1473 = vst [vmem:[%s483 + $0x38] sm:$0xff] %v1385
        %1474 = vst [vmem:[%s483 + $0x40] sm:$0xff] %v1387
        %1475 = vst [vmem:[%s483 + $0x48] sm:$0xff] %v1389
        %1476 = vst [vmem:[%s483 + $0x50] sm:$0xff] %v1391
        %1477 = vst [vmem:[%s483 + $0x58] sm:$0xff] %v1393
        %1478 = vst [vmem:[%s483 + $0x60] sm:$0xff] %v1395
        %1479 = vst [vmem:[%s483 + $0x68] sm:$0xff] %v1397
        %1480 = vst [vmem:[%s483 + $0x70] sm:$0xff] %v1399
        %1481 = vst [vmem:[%s483 + $0x78] sm:$0xff] %v1401
        %1482 = vst [vmem:[%s483 + $0x80] sm:$0xff] %v1403
        %1483 = vst [vmem:[%s483 + $0x88] sm:$0xff] %v1405
        %1484 = vst [vmem:[%s483 + $0x90] sm:$0xff] %v1407
        %1485 = vst [vmem:[%s483 + $0x98] sm:$0xff] %v1409
        %1486 = vst [vmem:[%s483 + $0xa0] sm:$0xff] %v1411
        %1487 = vst [vmem:[%s483 + $0xa8] sm:$0xff] %v1413
        %1488 = vst [vmem:[%s483 + $0xb0] sm:$0xff] %v1415
        %1489 = vst [vmem:[%s483 + $0xb8] sm:$0xff] %v1417
        %1490 = vst [vmem:[%s483 + $0xc0] sm:$0xff] %v1419
        %1491 = vst [vmem:[%s483 + $0xc8] sm:$0xff] %v1421
        %1492 = vst [vmem:[%s483 + $0xd0] sm:$0xff] %v1423
        %1493 = vst [vmem:[%s483 + $0xd8] sm:$0xff] %v1425
        %1494 = vst [vmem:[%s483 + $0xe0] sm:$0xff] %v1427
        %1495 = vst [vmem:[%s483 + $0xe8] sm:$0xff] %v1429
        %1496 = vst [vmem:[%s483 + $0xf0] sm:$0xff] %v1431
        %1497 = vst [vmem:[%s483 + $0xf8] sm:$0xff] %v1433
        %1498 = vst [vmem:[%s483 + $0x100] sm:$0xff] %v1435
        %1499 = vst [vmem:[%s483 + $0x108] sm:$0xff] %v1437
        %1500 = vst [vmem:[%s483 + $0x110] sm:$0xff] %v1439
        %1501 = vst [vmem:[%s483 + $0x118] sm:$0xff] %v1441
        %1502 = vst [vmem:[%s483 + $0x120] sm:$0xff] %v1443
        %1503 = vst [vmem:[%s483 + $0x128] sm:$0xff] %v1445
        %1504 = vst [vmem:[%s483 + $0x130] sm:$0xff] %v1447
        %1505 = vst [vmem:[%s483 + $0x138] sm:$0xff] %v1449
        %1506 = vst [vmem:[%s483 + $0x140] sm:$0xff] %v1451
        %1507 = vst [vmem:[%s483 + $0x148] sm:$0xff] %v1453
        %1508 = vst [vmem:[%s483 + $0x150] sm:$0xff] %v1455
        %1509 = vst [vmem:[%s483 + $0x158] sm:$0xff] %v1457
        %1510 = vst [vmem:[%s483 + $0x160] sm:$0xff] %v1459
        %1511 = vst [vmem:[%s483 + $0x168] sm:$0xff] %v1461
        %1512 = vst [vmem:[%s483 + $0x170] sm:$0xff] %v1463
        %1513 = vst [vmem:[%s483 + $0x178] sm:$0xff] %v1465
        %v1514 = vld [vmem:[%s514] sm:$0xff]
        %v1515 = vld [vmem:[%s514 + $0x8] sm:$0xff]
        %v1516 = vld [vmem:[%s514 + $0x10] sm:$0xff]
        %v1517 = vld [vmem:[%s514 + $0x18] sm:$0xff]
        %v1518 = vld [vmem:[%s514 + $0x20] sm:$0xff]
        %v1519 = vld [vmem:[%s514 + $0x28] sm:$0xff]
        %v1520 = vld [vmem:[%s514 + $0x30] sm:$0xff]
        %v1521 = vld [vmem:[%s514 + $0x38] sm:$0xff]
        %v1522 = vld [vmem:[%s514 + $0x40] sm:$0xff]
        %v1523 = vld [vmem:[%s514 + $0x48] sm:$0xff]
        %v1524 = vld [vmem:[%s514 + $0x50] sm:$0xff]
        %v1525 = vld [vmem:[%s514 + $0x58] sm:$0xff]
        %v1526 = vld [vmem:[%s514 + $0x60] sm:$0xff]
        %v1527 = vld [vmem:[%s514 + $0x68] sm:$0xff]
        %v1528 = vld [vmem:[%s514 + $0x70] sm:$0xff]
        %v1529 = vld [vmem:[%s514 + $0x78] sm:$0xff]
        %v1530 = vld [vmem:[%s520] sm:$0xff]
        %v1531 = vld [vmem:[%s520 + $0x8] sm:$0xff]
        %v1532 = vld [vmem:[%s520 + $0x10] sm:$0xff]
        %v1533 = vld [vmem:[%s520 + $0x18] sm:$0xff]
        %v1534 = vld [vmem:[%s520 + $0x20] sm:$0xff]
        %v1535 = vld [vmem:[%s520 + $0x28] sm:$0xff]
        %v1536 = vld [vmem:[%s520 + $0x30] sm:$0xff]
        %v1537 = vld [vmem:[%s520 + $0x38] sm:$0xff]
        %v1538 = vld [vmem:[%s520 + $0x40] sm:$0xff]
        %v1539 = vld [vmem:[%s520 + $0x48] sm:$0xff]
        %v1540 = vld [vmem:[%s520 + $0x50] sm:$0xff]
        %v1541 = vld [vmem:[%s520 + $0x58] sm:$0xff]
        %v1542 = vld [vmem:[%s520 + $0x60] sm:$0xff]
        %v1543 = vld [vmem:[%s520 + $0x68] sm:$0xff]
        %v1544 = vld [vmem:[%s520 + $0x70] sm:$0xff]
        %v1545 = vld [vmem:[%s520 + $0x78] sm:$0xff]
        %v1546 = vld [vmem:[%s520 + $0x80] sm:$0xff]
        %v1547 = vld [vmem:[%s520 + $0x88] sm:$0xff]
        %v1548 = vld [vmem:[%s520 + $0x90] sm:$0xff]
        %v1549 = vld [vmem:[%s520 + $0x98] sm:$0xff]
        %v1550 = vld [vmem:[%s520 + $0xa0] sm:$0xff]
        %v1551 = vld [vmem:[%s520 + $0xa8] sm:$0xff]
        %v1552 = vld [vmem:[%s520 + $0xb0] sm:$0xff]
        %v1553 = vld [vmem:[%s520 + $0xb8] sm:$0xff]
        %v1554 = vld [vmem:[%s520 + $0xc0] sm:$0xff]
        %v1555 = vld [vmem:[%s520 + $0xc8] sm:$0xff]
        %v1556 = vld [vmem:[%s520 + $0xd0] sm:$0xff]
        %v1557 = vld [vmem:[%s520 + $0xd8] sm:$0xff]
        %v1558 = vld [vmem:[%s520 + $0xe0] sm:$0xff]
        %v1559 = vld [vmem:[%s520 + $0xe8] sm:$0xff]
        %v1560 = vld [vmem:[%s520 + $0xf0] sm:$0xff]
        %v1561 = vld [vmem:[%s520 + $0xf8] sm:$0xff]
        %v1562 = vld [vmem:[%s520 + $0x100] sm:$0xff]
        %v1563 = vld [vmem:[%s520 + $0x108] sm:$0xff]
        %v1564 = vld [vmem:[%s520 + $0x110] sm:$0xff]
        %v1565 = vld [vmem:[%s520 + $0x118] sm:$0xff]
        %v1566 = vld [vmem:[%s520 + $0x120] sm:$0xff]
        %v1567 = vld [vmem:[%s520 + $0x128] sm:$0xff]
        %v1568 = vld [vmem:[%s520 + $0x130] sm:$0xff]
        %v1569 = vld [vmem:[%s520 + $0x138] sm:$0xff]
        %v1570 = vld [vmem:[%s520 + $0x140] sm:$0xff]
        %v1571 = vld [vmem:[%s520 + $0x148] sm:$0xff]
        %v1572 = vld [vmem:[%s520 + $0x150] sm:$0xff]
        %v1573 = vld [vmem:[%s520 + $0x158] sm:$0xff]
        %v1574 = vld [vmem:[%s520 + $0x160] sm:$0xff]
        %v1575 = vld [vmem:[%s520 + $0x168] sm:$0xff]
        %v1576 = vld [vmem:[%s520 + $0x170] sm:$0xff]
        %v1577 = vld [vmem:[%s520 + $0x178] sm:$0xff]
        %v1578 = vld [vmem:[%s537] sm:$0xff]
        %v1579 = vld [vmem:[%s537 + $0x8] sm:$0xff]
        %v1580 = vld [vmem:[%s537 + $0x10] sm:$0xff]
        %v1581 = vld [vmem:[%s537 + $0x18] sm:$0xff]
        %v1582 = vld [vmem:[%s537 + $0x20] sm:$0xff]
        %v1583 = vld [vmem:[%s537 + $0x28] sm:$0xff]
        %v1584 = vld [vmem:[%s537 + $0x30] sm:$0xff]
        %v1585 = vld [vmem:[%s537 + $0x38] sm:$0xff]
        %v1586 = vld [vmem:[%s537 + $0x40] sm:$0xff]
        %v1587 = vld [vmem:[%s537 + $0x48] sm:$0xff]
        %v1588 = vld [vmem:[%s537 + $0x50] sm:$0xff]
        %v1589 = vld [vmem:[%s537 + $0x58] sm:$0xff]
        %v1590 = vld [vmem:[%s537 + $0x60] sm:$0xff]
        %v1591 = vld [vmem:[%s537 + $0x68] sm:$0xff]
        %v1592 = vld [vmem:[%s537 + $0x70] sm:$0xff]
        %v1593 = vld [vmem:[%s537 + $0x78] sm:$0xff]
        %v1594 = vld [vmem:[%s542] sm:$0x7]
        %vm1595 = vcmask 64512
        %v1597 = vsel %vm1595, %v1514, 0
        %v1600 = vsel %vm1595, %v1515, 0
        %v1603 = vsel %vm1595, %v1516, 0
        %v1606 = vsel %vm1595, %v1517, 0
        %v1609 = vsel %vm1595, %v1518, 0
        %v1612 = vsel %vm1595, %v1519, 0
        %v1615 = vsel %vm1595, %v1520, 0
        %v1618 = vsel %vm1595, %v1521, 0
        %v1621 = vsel %vm1595, %v1522, 0
        %v1624 = vsel %vm1595, %v1523, 0
        %v1627 = vsel %vm1595, %v1524, 0
        %v1630 = vsel %vm1595, %v1525, 0
        %v1633 = vsel %vm1595, %v1526, 0
        %v1636 = vsel %vm1595, %v1527, 0
        %v1639 = vsel %vm1595, %v1528, 0
        %v1642 = vsel %vm1595, %v1529, 0
        %v1645 = vsel %vm1595, %v1530, 0
        %v1648 = vsel %vm1595, %v1531, 0
        %v1651 = vsel %vm1595, %v1532, 0
        %v1654 = vsel %vm1595, %v1533, 0
        %v1657 = vsel %vm1595, %v1534, 0
        %v1660 = vsel %vm1595, %v1535, 0
        %v1663 = vsel %vm1595, %v1536, 0
        %v1666 = vsel %vm1595, %v1537, 0
        %v1669 = vsel %vm1595, %v1538, 0
        %v1672 = vsel %vm1595, %v1539, 0
        %v1675 = vsel %vm1595, %v1540, 0
        %v1678 = vsel %vm1595, %v1541, 0
        %v1681 = vsel %vm1595, %v1542, 0
        %v1684 = vsel %vm1595, %v1543, 0
        %v1687 = vsel %vm1595, %v1544, 0
        %v1690 = vsel %vm1595, %v1545, 0
        %v1693 = vsel %vm1595, %v1546, 0
        %v1696 = vsel %vm1595, %v1547, 0
        %v1699 = vsel %vm1595, %v1548, 0
        %v1702 = vsel %vm1595, %v1549, 0
        %v1705 = vsel %vm1595, %v1550, 0
        %v1708 = vsel %vm1595, %v1551, 0
        %v1711 = vsel %vm1595, %v1552, 0
        %v1714 = vsel %vm1595, %v1553, 0
        %v1717 = vsel %vm1595, %v1554, 0
        %v1720 = vsel %vm1595, %v1555, 0
        %v1723 = vsel %vm1595, %v1556, 0
        %v1726 = vsel %vm1595, %v1557, 0
        %v1729 = vsel %vm1595, %v1558, 0
        %v1732 = vsel %vm1595, %v1559, 0
        %v1735 = vsel %vm1595, %v1560, 0
        %v1738 = vsel %vm1595, %v1561, 0
        %v1741 = vsel %vm1595, %v1562, 0
        %v1744 = vsel %vm1595, %v1563, 0
        %v1747 = vsel %vm1595, %v1564, 0
        %v1750 = vsel %vm1595, %v1565, 0
        %v1753 = vsel %vm1595, %v1566, 0
        %v1756 = vsel %vm1595, %v1567, 0
        %v1759 = vsel %vm1595, %v1568, 0
        %v1762 = vsel %vm1595, %v1569, 0
        %v1765 = vsel %vm1595, %v1570, 0
        %v1768 = vsel %vm1595, %v1571, 0
        %v1771 = vsel %vm1595, %v1572, 0
        %v1774 = vsel %vm1595, %v1573, 0
        %v1777 = vsel %vm1595, %v1574, 0
        %v1780 = vsel %vm1595, %v1575, 0
        %v1783 = vsel %vm1595, %v1576, 0
        %v1786 = vsel %vm1595, %v1577, 0
        %1788 = vmatprep.subr.mxu0 0.0
        %1789 = vmatpush1.xpose.msra.mxu0 %v1645
        %1790 = vmatprep.subr.mxu0 0.0
        %1791 = vmatpush1.xpose.msra.mxu0 %v1648
        %1792 = vmatprep.subr.mxu0 0.0
        %1793 = vmatpush1.xpose.msra.mxu0 %v1651
        %1794 = vmatprep.subr.mxu0 0.0
        %1795 = vmatpush1.xpose.msra.mxu0 %v1654
        %1796 = vmatprep.subr.mxu0 0.0
        %1797 = vmatpush1.xpose.msra.mxu0 %v1657
        %1798 = vmatprep.subr.mxu0 0.0
        %1799 = vmatpush1.xpose.msra.mxu0 %v1660
        %1800 = vmatprep.subr.mxu0 0.0
        %1801 = vmatpush1.xpose.msra.mxu0 %v1663
        %1802 = vmatprep.subr.mxu0 0.0
        %1803 = vmatpush1.xpose.msra.mxu0 %v1666
        %1804 = vmatprep.subr.mxu0 0.0
        %1805 = vmatpush1.xpose.msra.mxu0 %v1669
        %1806 = vmatprep.subr.mxu0 0.0
        %1807 = vmatpush1.xpose.msra.mxu0 %v1672
        %1808 = vmatprep.subr.mxu0 0.0
        %1809 = vmatpush1.xpose.msra.mxu0 %v1675
        %1810 = vmatprep.subr.mxu0 0.0
        %1811 = vmatpush1.xpose.msra.mxu0 %v1678
        %1812 = vmatprep.subr.mxu0 0.0
        %1813 = vmatpush1.xpose.msra.mxu0 %v1681
        %1814 = vmatprep.subr.mxu0 0.0
        %1815 = vmatpush1.xpose.msra.mxu0 %v1684
        %1816 = vmatprep.subr.mxu0 0.0
        %1817 = vmatpush1.xpose.msra.mxu0 %v1687
        %1818 = vmatprep.subr.mxu0 0.0
        %1819 = vmatpush1.xpose.msra.mxu0 %v1690
        %1820 = vmatprep.subr.mxu0 0.0
        %1821 = vmatpush1.xpose.msra.mxu0 %v1693
        %1822 = vmatprep.subr.mxu0 0.0
        %1823 = vmatpush1.xpose.msra.mxu0 %v1696
        %1824 = vmatprep.subr.mxu0 0.0
        %1825 = vmatpush1.xpose.msra.mxu0 %v1699
        %1826 = vmatprep.subr.mxu0 0.0
        %1827 = vmatpush1.xpose.msra.mxu0 %v1702
        %1828 = vmatprep.subr.mxu0 0.0
        %1829 = vmatpush1.xpose.msra.mxu0 %v1705
        %1830 = vmatprep.subr.mxu0 0.0
        %1831 = vmatpush1.xpose.msra.mxu0 %v1708
        %1832 = vmatprep.subr.mxu0 0.0
        %1833 = vmatpush1.xpose.msra.mxu0 %v1711
        %1834 = vmatprep.subr.mxu0 0.0
        %1835 = vmatpush1.xpose.msra.mxu0 %v1714
        %1836 = vmatprep.subr.mxu0 0.0
        %1837 = vmatpush1.xpose.msra.mxu0 %v1717
        %1838 = vmatprep.subr.mxu0 0.0
        %1839 = vmatpush1.xpose.msra.mxu0 %v1720
        %1840 = vmatprep.subr.mxu0 0.0
        %1841 = vmatpush1.xpose.msra.mxu0 %v1723
        %1842 = vmatprep.subr.mxu0 0.0
        %1843 = vmatpush1.xpose.msra.mxu0 %v1726
        %1844 = vmatprep.subr.mxu0 0.0
        %1845 = vmatpush1.xpose.msra.mxu0 %v1729
        %1846 = vmatprep.subr.mxu0 0.0
        %1847 = vmatpush1.xpose.msra.mxu0 %v1732
        %1848 = vmatprep.subr.mxu0 0.0
        %1849 = vmatpush1.xpose.msra.mxu0 %v1735
        %1850 = vmatprep.subr.mxu0 0.0
        %1851 = vmatpush1.xpose.msra.mxu0 %v1738
        %1852 = vmatprep.mubr.f32.mxu0 0.0
        %1853 = vmatmul.mubr.f32.gmra.mrb[0].mxu0 %v1597
        %v1854 = vpop.f32.mrb[0].mxu0
        %v1855 = vadd.f32 0.0, %v1854
        %v1856 = vpop.f32.mrb[0].mxu0
        %v1857 = vadd.f32 0.0, %v1856
        %1858 = vmatprep.mubr.f32.mxu0 0.0
        %1859 = vmatmul.mubr.f32.gmra.mrb[0].mxu0 %v1600
        %v1860 = vpop.f32.mrb[0].mxu0
        %v1861 = vadd.f32 0.0, %v1860
        %v1862 = vpop.f32.mrb[0].mxu0
        %v1863 = vadd.f32 0.0, %v1862
        %1864 = vmatprep.mubr.f32.mxu0 0.0
        %1865 = vmatmul.mubr.f32.gmra.mrb[0].mxu0 %v1603
        %v1866 = vpop.f32.mrb[0].mxu0
        %v1867 = vadd.f32 0.0, %v1866
        %v1868 = vpop.f32.mrb[0].mxu0
        %v1869 = vadd.f32 0.0, %v1868
        %1870 = vmatprep.mubr.f32.mxu0 0.0
        %1871 = vmatmul.mubr.f32.gmra.mrb[0].mxu0 %v1606
        %v1872 = vpop.f32.mrb[0].mxu0
        %v1873 = vadd.f32 0.0, %v1872
        %v1874 = vpop.f32.mrb[0].mxu0
        %v1875 = vadd.f32 0.0, %v1874
        %1876 = vmatprep.mubr.f32.mxu0 0.0
        %1877 = vmatmul.mubr.f32.gmra.mrb[0].mxu0 %v1609
        %v1878 = vpop.f32.mrb[0].mxu0
        %v1879 = vadd.f32 0.0, %v1878
        %v1880 = vpop.f32.mrb[0].mxu0
        %v1881 = vadd.f32 0.0, %v1880
        %1882 = vmatprep.mubr.f32.mxu0 0.0
        %1883 = vmatmul.mubr.f32.gmra.mrb[0].mxu0 %v1612
        %v1884 = vpop.f32.mrb[0].mxu0
        %v1885 = vadd.f32 0.0, %v1884
        %v1886 = vpop.f32.mrb[0].mxu0
        %v1887 = vadd.f32 0.0, %v1886
        %1888 = vmatprep.mubr.f32.mxu0 0.0
        %1889 = vmatmul.mubr.f32.gmra.mrb[0].mxu0 %v1615
        %v1890 = vpop.f32.mrb[0].mxu0
        %v1891 = vadd.f32 0.0, %v1890
        %v1892 = vpop.f32.mrb[0].mxu0
        %v1893 = vadd.f32 0.0, %v1892
        %1894 = vmatprep.mubr.f32.mxu0 0.0
        %1895 = vmatmul.mubr.f32.gmra.mrb[0].mxu0 %v1618
        %v1896 = vpop.f32.mrb[0].mxu0
        %v1897 = vadd.f32 0.0, %v1896
        %v1898 = vpop.f32.mrb[0].mxu0
        %v1899 = vadd.f32 0.0, %v1898
        %1900 = vmatprep.mubr.f32.mxu0 0.0
        %1901 = vmatmul.mubr.f32.gmra.mrb[0].mxu0 %v1621
        %v1902 = vpop.f32.mrb[0].mxu0
        %v1903 = vadd.f32 0.0, %v1902
        %v1904 = vpop.f32.mrb[0].mxu0
        %v1905 = vadd.f32 0.0, %v1904
        %1906 = vmatprep.mubr.f32.mxu0 0.0
        %1907 = vmatmul.mubr.f32.gmra.mrb[0].mxu0 %v1624
        %v1908 = vpop.f32.mrb[0].mxu0
        %v1909 = vadd.f32 0.0, %v1908
        %v1910 = vpop.f32.mrb[0].mxu0
        %v1911 = vadd.f32 0.0, %v1910
        %1912 = vmatprep.mubr.f32.mxu0 0.0
        %1913 = vmatmul.mubr.f32.gmra.mrb[0].mxu0 %v1627
        %v1914 = vpop.f32.mrb[0].mxu0
        %v1915 = vadd.f32 0.0, %v1914
        %v1916 = vpop.f32.mrb[0].mxu0
        %v1917 = vadd.f32 0.0, %v1916
        %1918 = vmatprep.mubr.f32.mxu0 0.0
        %1919 = vmatmul.mubr.f32.gmra.mrb[0].mxu0 %v1630
        %v1920 = vpop.f32.mrb[0].mxu0
        %v1921 = vadd.f32 0.0, %v1920
        %v1922 = vpop.f32.mrb[0].mxu0
        %v1923 = vadd.f32 0.0, %v1922
        %1924 = vmatprep.mubr.f32.mxu0 0.0
        %1925 = vmatmul.mubr.f32.gmra.mrb[0].mxu0 %v1633
        %v1926 = vpop.f32.mrb[0].mxu0
        %v1927 = vadd.f32 0.0, %v1926
        %v1928 = vpop.f32.mrb[0].mxu0
        %v1929 = vadd.f32 0.0, %v1928
        %1930 = vmatprep.mubr.f32.mxu0 0.0
        %1931 = vmatmul.mubr.f32.gmra.mrb[0].mxu0 %v1636
        %v1932 = vpop.f32.mrb[0].mxu0
        %v1933 = vadd.f32 0.0, %v1932
        %v1934 = vpop.f32.mrb[0].mxu0
        %v1935 = vadd.f32 0.0, %v1934
        %1936 = vmatprep.mubr.f32.mxu0 0.0
        %1937 = vmatmul.mubr.f32.gmra.mrb[0].mxu0 %v1639
        %v1938 = vpop.f32.mrb[0].mxu0
        %v1939 = vadd.f32 0.0, %v1938
        %v1940 = vpop.f32.mrb[0].mxu0
        %v1941 = vadd.f32 0.0, %v1940
        %1942 = vmatprep.mubr.f32.mxu0 0.0
        %1943 = vmatmul.mubr.f32.gmra.mrb[0].mxu0 %v1642
        %v1944 = vpop.f32.mrb[0].mxu0
        %v1945 = vadd.f32 0.0, %v1944
        %v1946 = vpop.f32.mrb[0].mxu0
        %v1947 = vadd.f32 0.0, %v1946
        %1948 = vdwg.mxu0
        %1949 = vmatprep.subr.mxu0 0.0
        %1950 = vmatpush1.xpose.msra.mxu0 %v1741
        %1951 = vmatprep.subr.mxu0 0.0
        %1952 = vmatpush1.xpose.msra.mxu0 %v1744
        %1953 = vmatprep.subr.mxu0 0.0
        %1954 = vmatpush1.xpose.msra.mxu0 %v1747
        %1955 = vmatprep.subr.mxu0 0.0
        %1956 = vmatpush1.xpose.msra.mxu0 %v1750
        %1957 = vmatprep.subr.mxu0 0.0
        %1958 = vmatpush1.xpose.msra.mxu0 %v1753
        %1959 = vmatprep.subr.mxu0 0.0
        %1960 = vmatpush1.xpose.msra.mxu0 %v1756
        %1961 = vmatprep.subr.mxu0 0.0
        %1962 = vmatpush1.xpose.msra.mxu0 %v1759
        %1963 = vmatprep.subr.mxu0 0.0
        %1964 = vmatpush1.xpose.msra.mxu0 %v1762
        %1965 = vmatprep.subr.mxu0 0.0
        %1966 = vmatpush1.xpose.msra.mxu0 %v1765
        %1967 = vmatprep.subr.mxu0 0.0
        %1968 = vmatpush1.xpose.msra.mxu0 %v1768
        %1969 = vmatprep.subr.mxu0 0.0
        %1970 = vmatpush1.xpose.msra.mxu0 %v1771
        %1971 = vmatprep.subr.mxu0 0.0
        %1972 = vmatpush1.xpose.msra.mxu0 %v1774
        %1973 = vmatprep.subr.mxu0 0.0
        %1974 = vmatpush1.xpose.msra.mxu0 %v1777
        %1975 = vmatprep.subr.mxu0 0.0
        %1976 = vmatpush1.xpose.msra.mxu0 %v1780
        %1977 = vmatprep.subr.mxu0 0.0
        %1978 = vmatpush1.xpose.msra.mxu0 %v1783
        %1979 = vmatprep.subr.mxu0 0.0
        %1980 = vmatpush1.xpose.msra.mxu0 %v1786
        %1981 = vmatprep.subr.mxu0 0.0
        %1982 = vmatpush1.xpose.msra.mxu0 0.0
        %1983 = vmatprep.subr.mxu0 0.0
        %1984 = vmatpush1.xpose.msra.mxu0 0.0
        %1985 = vmatprep.subr.mxu0 0.0
        %1986 = vmatpush1.xpose.msra.mxu0 0.0
        %1987 = vmatprep.subr.mxu0 0.0
        %1988 = vmatpush1.xpose.msra.mxu0 0.0
        %1989 = vmatprep.subr.mxu0 0.0
        %1990 = vmatpush1.xpose.msra.mxu0 0.0
        %1991 = vmatprep.subr.mxu0 0.0
        %1992 = vmatpush1.xpose.msra.mxu0 0.0
        %1993 = vmatprep.subr.mxu0 0.0
        %1994 = vmatpush1.xpose.msra.mxu0 0.0
        %1995 = vmatprep.subr.mxu0 0.0
        %1996 = vmatpush1.xpose.msra.mxu0 0.0
        %1997 = vmatprep.subr.mxu0 0.0
        %1998 = vmatpush1.xpose.msra.mxu0 0.0
        %1999 = vmatprep.subr.mxu0 0.0
        %2000 = vmatpush1.xpose.msra.mxu0 0.0
        %2001 = vmatprep.subr.mxu0 0.0
        %2002 = vmatpush1.xpose.msra.mxu0 0.0
        %2003 = vmatprep.subr.mxu0 0.0
        %2004 = vmatpush1.xpose.msra.mxu0 0.0
        %2005 = vmatprep.subr.mxu0 0.0
        %2006 = vmatpush1.xpose.msra.mxu0 0.0
        %2007 = vmatprep.subr.mxu0 0.0
        %2008 = vmatpush1.xpose.msra.mxu0 0.0
        %2009 = vmatprep.subr.mxu0 0.0
        %2010 = vmatpush1.xpose.msra.mxu0 0.0
        %2011 = vmatprep.subr.mxu0 0.0
        %2012 = vmatpush1.xpose.msra.mxu0 0.0
        %2013 = vmatprep.mubr.f32.mxu0 0.0
        %2014 = vmatmul.mubr.f32.gmra.mrb[0].mxu0 %v1597
        %v2015 = vpop.f32.mrb[0].mxu0
        %v2016 = vadd.f32 0.0, %v2015
        %v2017 = vpop.f32.mrb[0].mxu0
        %2018 = vmatprep.mubr.f32.mxu0 0.0
        %2019 = vmatmul.mubr.f32.gmra.mrb[0].mxu0 %v1600
        %v2020 = vpop.f32.mrb[0].mxu0
        %v2021 = vadd.f32 0.0, %v2020
        %v2022 = vpop.f32.mrb[0].mxu0
        %2023 = vmatprep.mubr.f32.mxu0 0.0
        %2024 = vmatmul.mubr.f32.gmra.mrb[0].mxu0 %v1603
        %v2025 = vpop.f32.mrb[0].mxu0
        %v2026 = vadd.f32 0.0, %v2025
        %v2027 = vpop.f32.mrb[0].mxu0
        %2028 = vmatprep.mubr.f32.mxu0 0.0
        %2029 = vmatmul.mubr.f32.gmra.mrb[0].mxu0 %v1606
        %v2030 = vpop.f32.mrb[0].mxu0
        %v2031 = vadd.f32 0.0, %v2030
        %v2032 = vpop.f32.mrb[0].mxu0
        %2033 = vmatprep.mubr.f32.mxu0 0.0
        %2034 = vmatmul.mubr.f32.gmra.mrb[0].mxu0 %v1609
        %v2035 = vpop.f32.mrb[0].mxu0
        %v2036 = vadd.f32 0.0, %v2035
        %v2037 = vpop.f32.mrb[0].mxu0
        %2038 = vmatprep.mubr.f32.mxu0 0.0
        %2039 = vmatmul.mubr.f32.gmra.mrb[0].mxu0 %v1612
        %v2040 = vpop.f32.mrb[0].mxu0
        %v2041 = vadd.f32 0.0, %v2040
        %v2042 = vpop.f32.mrb[0].mxu0
        %2043 = vmatprep.mubr.f32.mxu0 0.0
        %2044 = vmatmul.mubr.f32.gmra.mrb[0].mxu0 %v1615
        %v2045 = vpop.f32.mrb[0].mxu0
        %v2046 = vadd.f32 0.0, %v2045
        %v2047 = vpop.f32.mrb[0].mxu0
        %2048 = vmatprep.mubr.f32.mxu0 0.0
        %2049 = vmatmul.mubr.f32.gmra.mrb[0].mxu0 %v1618
        %v2050 = vpop.f32.mrb[0].mxu0
        %v2051 = vadd.f32 0.0, %v2050
        %v2052 = vpop.f32.mrb[0].mxu0
        %2053 = vmatprep.mubr.f32.mxu0 0.0
        %2054 = vmatmul.mubr.f32.gmra.mrb[0].mxu0 %v1621
        %v2055 = vpop.f32.mrb[0].mxu0
        %v2056 = vadd.f32 0.0, %v2055
        %v2057 = vpop.f32.mrb[0].mxu0
        %2058 = vmatprep.mubr.f32.mxu0 0.0
        %2059 = vmatmul.mubr.f32.gmra.mrb[0].mxu0 %v1624
        %v2060 = vpop.f32.mrb[0].mxu0
        %v2061 = vadd.f32 0.0, %v2060
        %v2062 = vpop.f32.mrb[0].mxu0
        %2063 = vmatprep.mubr.f32.mxu0 0.0
        %2064 = vmatmul.mubr.f32.gmra.mrb[0].mxu0 %v1627
        %v2065 = vpop.f32.mrb[0].mxu0
        %v2066 = vadd.f32 0.0, %v2065
        %v2067 = vpop.f32.mrb[0].mxu0
        %2068 = vmatprep.mubr.f32.mxu0 0.0
        %2069 = vmatmul.mubr.f32.gmra.mrb[0].mxu0 %v1630
        %v2070 = vpop.f32.mrb[0].mxu0
        %v2071 = vadd.f32 0.0, %v2070
        %v2072 = vpop.f32.mrb[0].mxu0
        %2073 = vmatprep.mubr.f32.mxu0 0.0
        %2074 = vmatmul.mubr.f32.gmra.mrb[0].mxu0 %v1633
        %v2075 = vpop.f32.mrb[0].mxu0
        %v2076 = vadd.f32 0.0, %v2075
        %v2077 = vpop.f32.mrb[0].mxu0
        %2078 = vmatprep.mubr.f32.mxu0 0.0
        %2079 = vmatmul.mubr.f32.gmra.mrb[0].mxu0 %v1636
        %v2080 = vpop.f32.mrb[0].mxu0
        %v2081 = vadd.f32 0.0, %v2080
        %v2082 = vpop.f32.mrb[0].mxu0
        %2083 = vmatprep.mubr.f32.mxu0 0.0
        %2084 = vmatmul.mubr.f32.gmra.mrb[0].mxu0 %v1639
        %v2085 = vpop.f32.mrb[0].mxu0
        %v2086 = vadd.f32 0.0, %v2085
        %v2087 = vpop.f32.mrb[0].mxu0
        %2088 = vmatprep.mubr.f32.mxu0 0.0
        %2089 = vmatmul.mubr.f32.gmra.mrb[0].mxu0 %v1642
        %v2090 = vpop.f32.mrb[0].mxu0
        %v2091 = vadd.f32 0.0, %v2090
        %v2092 = vpop.f32.mrb[0].mxu0
        %2093 = vdwg.mxu0
        %2095 = vset.pattern.permute.xlu0 0
        %2096 = vperm.xlu0 %2095, %v1578
        %v2097 = vpop.permute.xlu0 %2096
        %2100 = vset.pattern.permute.xlu0 0
        %2101 = vperm.xlu0 %2100, %v1579
        %v2102 = vpop.permute.xlu0 %2101
        %2105 = vset.pattern.permute.xlu0 0
        %2106 = vperm.xlu0 %2105, %v1580
        %v2107 = vpop.permute.xlu0 %2106
        %2110 = vset.pattern.permute.xlu0 0
        %2111 = vperm.xlu0 %2110, %v1581
        %v2112 = vpop.permute.xlu0 %2111
        %2115 = vset.pattern.permute.xlu0 0
        %2116 = vperm.xlu0 %2115, %v1582
        %v2117 = vpop.permute.xlu0 %2116
        %2120 = vset.pattern.permute.xlu0 0
        %2121 = vperm.xlu0 %2120, %v1583
        %v2122 = vpop.permute.xlu0 %2121
        %2125 = vset.pattern.permute.xlu0 0
        %2126 = vperm.xlu0 %2125, %v1584
        %v2127 = vpop.permute.xlu0 %2126
        %2130 = vset.pattern.permute.xlu0 0
        %2131 = vperm.xlu0 %2130, %v1585
        %v2132 = vpop.permute.xlu0 %2131
        %2135 = vset.pattern.permute.xlu0 0
        %2136 = vperm.xlu0 %2135, %v1586
        %v2137 = vpop.permute.xlu0 %2136
        %2140 = vset.pattern.permute.xlu0 0
        %2141 = vperm.xlu0 %2140, %v1587
        %v2142 = vpop.permute.xlu0 %2141
        %2145 = vset.pattern.permute.xlu0 0
        %2146 = vperm.xlu0 %2145, %v1588
        %v2147 = vpop.permute.xlu0 %2146
        %2150 = vset.pattern.permute.xlu0 0
        %2151 = vperm.xlu0 %2150, %v1589
        %v2152 = vpop.permute.xlu0 %2151
        %2155 = vset.pattern.permute.xlu0 0
        %2156 = vperm.xlu0 %2155, %v1590
        %v2157 = vpop.permute.xlu0 %2156
        %2160 = vset.pattern.permute.xlu0 0
        %2161 = vperm.xlu0 %2160, %v1591
        %v2162 = vpop.permute.xlu0 %2161
        %2165 = vset.pattern.permute.xlu0 0
        %2166 = vperm.xlu0 %2165, %v1592
        %v2167 = vpop.permute.xlu0 %2166
        %2170 = vset.pattern.permute.xlu0 0
        %2171 = vperm.xlu0 %2170, %v1593
        %v2172 = vpop.permute.xlu0 %2171
        %v2175 = vlaneseq
        %v2176 = vshrl.u32 %v2175, 7
        %v2177 = vsub.s32 0, %v2176
        %v2178 = vrot.slane %v1594, %v2177
        %v2179 = vlaneseq
        %v2180 = vshrl.u32 %v2179, 7
        %v2181 = vsub.s32 1, %v2180
        %v2182 = vrot.slane %v1594, %v2181
        %v2183 = vlaneseq
        %v2184 = vshrl.u32 %v2183, 7
        %v2185 = vsub.s32 2, %v2184
        %v2186 = vrot.slane %v1594, %v2185
        %v2190 = vadd.f32 %v2097, %v2178
        %v2191 = vadd.f32 %v2097, %v2182
        %v2192 = vadd.f32 %v2097, %v2186
        %v2193 = vadd.f32 %v2102, %v2178
        %v2194 = vadd.f32 %v2102, %v2182
        %v2195 = vadd.f32 %v2102, %v2186
        %v2196 = vadd.f32 %v2107, %v2178
        %v2197 = vadd.f32 %v2107, %v2182
        %v2198 = vadd.f32 %v2107, %v2186
        %v2199 = vadd.f32 %v2112, %v2178
        %v2200 = vadd.f32 %v2112, %v2182
        %v2201 = vadd.f32 %v2112, %v2186
        %v2202 = vadd.f32 %v2117, %v2178
        %v2203 = vadd.f32 %v2117, %v2182
        %v2204 = vadd.f32 %v2117, %v2186
        %v2205 = vadd.f32 %v2122, %v2178
        %v2206 = vadd.f32 %v2122, %v2182
        %v2207 = vadd.f32 %v2122, %v2186
        %v2208 = vadd.f32 %v2127, %v2178
        %v2209 = vadd.f32 %v2127, %v2182
        %v2210 = vadd.f32 %v2127, %v2186
        %v2211 = vadd.f32 %v2132, %v2178
        %v2212 = vadd.f32 %v2132, %v2182
        %v2213 = vadd.f32 %v2132, %v2186
        %v2214 = vadd.f32 %v2137, %v2178
        %v2215 = vadd.f32 %v2137, %v2182
        %v2216 = vadd.f32 %v2137, %v2186
        %v2217 = vadd.f32 %v2142, %v2178
        %v2218 = vadd.f32 %v2142, %v2182
        %v2219 = vadd.f32 %v2142, %v2186
        %v2220 = vadd.f32 %v2147, %v2178
        %v2221 = vadd.f32 %v2147, %v2182
        %v2222 = vadd.f32 %v2147, %v2186
        %v2223 = vadd.f32 %v2152, %v2178
        %v2224 = vadd.f32 %v2152, %v2182
        %v2225 = vadd.f32 %v2152, %v2186
        %v2226 = vadd.f32 %v2157, %v2178
        %v2227 = vadd.f32 %v2157, %v2182
        %v2228 = vadd.f32 %v2157, %v2186
        %v2229 = vadd.f32 %v2162, %v2178
        %v2230 = vadd.f32 %v2162, %v2182
        %v2231 = vadd.f32 %v2162, %v2186
        %v2232 = vadd.f32 %v2167, %v2178
        %v2233 = vadd.f32 %v2167, %v2182
        %v2234 = vadd.f32 %v2167, %v2186
        %v2235 = vadd.f32 %v2172, %v2178
        %v2236 = vadd.f32 %v2172, %v2182
        %v2237 = vadd.f32 %v2172, %v2186
        %v2238 = vadd.f32 %v2190, %v1855
        %v2239 = vadd.f32 %v2191, %v1857
        %v2240 = vadd.f32 %v2192, %v2016
        %v2241 = vadd.f32 %v2193, %v1861
        %v2242 = vadd.f32 %v2194, %v1863
        %v2243 = vadd.f32 %v2195, %v2021
        %v2244 = vadd.f32 %v2196, %v1867
        %v2245 = vadd.f32 %v2197, %v1869
        %v2246 = vadd.f32 %v2198, %v2026
        %v2247 = vadd.f32 %v2199, %v1873
        %v2248 = vadd.f32 %v2200, %v1875
        %v2249 = vadd.f32 %v2201, %v2031
        %v2250 = vadd.f32 %v2202, %v1879
        %v2251 = vadd.f32 %v2203, %v1881
        %v2252 = vadd.f32 %v2204, %v2036
        %v2253 = vadd.f32 %v2205, %v1885
        %v2254 = vadd.f32 %v2206, %v1887
        %v2255 = vadd.f32 %v2207, %v2041
        %v2256 = vadd.f32 %v2208, %v1891
        %v2257 = vadd.f32 %v2209, %v1893
        %v2258 = vadd.f32 %v2210, %v2046
        %v2259 = vadd.f32 %v2211, %v1897
        %v2260 = vadd.f32 %v2212, %v1899
        %v2261 = vadd.f32 %v2213, %v2051
        %v2262 = vadd.f32 %v2214, %v1903
        %v2263 = vadd.f32 %v2215, %v1905
        %v2264 = vadd.f32 %v2216, %v2056
        %v2265 = vadd.f32 %v2217, %v1909
        %v2266 = vadd.f32 %v2218, %v1911
        %v2267 = vadd.f32 %v2219, %v2061
        %v2268 = vadd.f32 %v2220, %v1915
        %v2269 = vadd.f32 %v2221, %v1917
        %v2270 = vadd.f32 %v2222, %v2066
        %v2271 = vadd.f32 %v2223, %v1921
        %v2272 = vadd.f32 %v2224, %v1923
        %v2273 = vadd.f32 %v2225, %v2071
        %v2274 = vadd.f32 %v2226, %v1927
        %v2275 = vadd.f32 %v2227, %v1929
        %v2276 = vadd.f32 %v2228, %v2076
        %v2277 = vadd.f32 %v2229, %v1933
        %v2278 = vadd.f32 %v2230, %v1935
        %v2279 = vadd.f32 %v2231, %v2081
        %v2280 = vadd.f32 %v2232, %v1939
        %v2281 = vadd.f32 %v2233, %v1941
        %v2282 = vadd.f32 %v2234, %v2086
        %v2283 = vadd.f32 %v2235, %v1945
        %v2284 = vadd.f32 %v2236, %v1947
        %v2285 = vadd.f32 %v2237, %v2091
        %v2286 = vmin.f32 %v2238, 0.0
        %v2287 = vmin.f32 %v2239, 0.0
        %v2288 = vmin.f32 %v2240, 0.0
        %v2289 = vmin.f32 %v2241, 0.0
        %v2290 = vmin.f32 %v2242, 0.0
        %v2291 = vmin.f32 %v2243, 0.0
        %v2292 = vmin.f32 %v2244, 0.0
        %v2293 = vmin.f32 %v2245, 0.0
        %v2294 = vmin.f32 %v2246, 0.0
        %v2295 = vmin.f32 %v2247, 0.0
        %v2296 = vmin.f32 %v2248, 0.0
        %v2297 = vmin.f32 %v2249, 0.0
        %v2298 = vmin.f32 %v2250, 0.0
        %v2299 = vmin.f32 %v2251, 0.0
        %v2300 = vmin.f32 %v2252, 0.0
        %v2301 = vmin.f32 %v2253, 0.0
        %v2302 = vmin.f32 %v2254, 0.0
        %v2303 = vmin.f32 %v2255, 0.0
        %v2304 = vmin.f32 %v2256, 0.0
        %v2305 = vmin.f32 %v2257, 0.0
        %v2306 = vmin.f32 %v2258, 0.0
        %v2307 = vmin.f32 %v2259, 0.0
        %v2308 = vmin.f32 %v2260, 0.0
        %v2309 = vmin.f32 %v2261, 0.0
        %v2310 = vmin.f32 %v2262, 0.0
        %v2311 = vmin.f32 %v2263, 0.0
        %v2312 = vmin.f32 %v2264, 0.0
        %v2313 = vmin.f32 %v2265, 0.0
        %v2314 = vmin.f32 %v2266, 0.0
        %v2315 = vmin.f32 %v2267, 0.0
        %v2316 = vmin.f32 %v2268, 0.0
        %v2317 = vmin.f32 %v2269, 0.0
        %v2318 = vmin.f32 %v2270, 0.0
        %v2319 = vmin.f32 %v2271, 0.0
        %v2320 = vmin.f32 %v2272, 0.0
        %v2321 = vmin.f32 %v2273, 0.0
        %v2322 = vmin.f32 %v2274, 0.0
        %v2323 = vmin.f32 %v2275, 0.0
        %v2324 = vmin.f32 %v2276, 0.0
        %v2325 = vmin.f32 %v2277, 0.0
        %v2326 = vmin.f32 %v2278, 0.0
        %v2327 = vmin.f32 %v2279, 0.0
        %v2328 = vmin.f32 %v2280, 0.0
        %v2329 = vmin.f32 %v2281, 0.0
        %v2330 = vmin.f32 %v2282, 0.0
        %v2331 = vmin.f32 %v2283, 0.0
        %v2332 = vmin.f32 %v2284, 0.0
        %v2333 = vmin.f32 %v2285, 0.0
        %v2334 = vmul.f32 %v2286, 1.442695
        %v2335 = vpow.pop %v2334
        %v2336 = vmul.f32 %v2287, 1.442695
        %v2337 = vpow.pop %v2336
        %v2338 = vmul.f32 %v2288, 1.442695
        %v2339 = vpow.pop %v2338
        %v2340 = vmul.f32 %v2289, 1.442695
        %v2341 = vpow.pop %v2340
        %v2342 = vmul.f32 %v2290, 1.442695
        %v2343 = vpow.pop %v2342
        %v2344 = vmul.f32 %v2291, 1.442695
        %v2345 = vpow.pop %v2344
        %v2346 = vmul.f32 %v2292, 1.442695
        %v2347 = vpow.pop %v2346
        %v2348 = vmul.f32 %v2293, 1.442695
        %v2349 = vpow.pop %v2348
        %v2350 = vmul.f32 %v2294, 1.442695
        %v2351 = vpow.pop %v2350
        %v2352 = vmul.f32 %v2295, 1.442695
        %v2353 = vpow.pop %v2352
        %v2354 = vmul.f32 %v2296, 1.442695
        %v2355 = vpow.pop %v2354
        %v2356 = vmul.f32 %v2297, 1.442695
        %v2357 = vpow.pop %v2356
        %v2358 = vmul.f32 %v2298, 1.442695
        %v2359 = vpow.pop %v2358
        %v2360 = vmul.f32 %v2299, 1.442695
        %v2361 = vpow.pop %v2360
        %v2362 = vmul.f32 %v2300, 1.442695
        %v2363 = vpow.pop %v2362
        %v2364 = vmul.f32 %v2301, 1.442695
        %v2365 = vpow.pop %v2364
        %v2366 = vmul.f32 %v2302, 1.442695
        %v2367 = vpow.pop %v2366
        %v2368 = vmul.f32 %v2303, 1.442695
        %v2369 = vpow.pop %v2368
        %v2370 = vmul.f32 %v2304, 1.442695
        %v2371 = vpow.pop %v2370
        %v2372 = vmul.f32 %v2305, 1.442695
        %v2373 = vpow.pop %v2372
        %v2374 = vmul.f32 %v2306, 1.442695
        %v2375 = vpow.pop %v2374
        %v2376 = vmul.f32 %v2307, 1.442695
        %v2377 = vpow.pop %v2376
        %v2378 = vmul.f32 %v2308, 1.442695
        %v2379 = vpow.pop %v2378
        %v2380 = vmul.f32 %v2309, 1.442695
        %v2381 = vpow.pop %v2380
        %v2382 = vmul.f32 %v2310, 1.442695
        %v2383 = vpow.pop %v2382
        %v2384 = vmul.f32 %v2311, 1.442695
        %v2385 = vpow.pop %v2384
        %v2386 = vmul.f32 %v2312, 1.442695
        %v2387 = vpow.pop %v2386
        %v2388 = vmul.f32 %v2313, 1.442695
        %v2389 = vpow.pop %v2388
        %v2390 = vmul.f32 %v2314, 1.442695
        %v2391 = vpow.pop %v2390
        %v2392 = vmul.f32 %v2315, 1.442695
        %v2393 = vpow.pop %v2392
        %v2394 = vmul.f32 %v2316, 1.442695
        %v2395 = vpow.pop %v2394
        %v2396 = vmul.f32 %v2317, 1.442695
        %v2397 = vpow.pop %v2396
        %v2398 = vmul.f32 %v2318, 1.442695
        %v2399 = vpow.pop %v2398
        %v2400 = vmul.f32 %v2319, 1.442695
        %v2401 = vpow.pop %v2400
        %v2402 = vmul.f32 %v2320, 1.442695
        %v2403 = vpow.pop %v2402
        %v2404 = vmul.f32 %v2321, 1.442695
        %v2405 = vpow.pop %v2404
        %v2406 = vmul.f32 %v2322, 1.442695
        %v2407 = vpow.pop %v2406
        %v2408 = vmul.f32 %v2323, 1.442695
        %v2409 = vpow.pop %v2408
        %v2410 = vmul.f32 %v2324, 1.442695
        %v2411 = vpow.pop %v2410
        %v2412 = vmul.f32 %v2325, 1.442695
        %v2413 = vpow.pop %v2412
        %v2414 = vmul.f32 %v2326, 1.442695
        %v2415 = vpow.pop %v2414
        %v2416 = vmul.f32 %v2327, 1.442695
        %v2417 = vpow.pop %v2416
        %v2418 = vmul.f32 %v2328, 1.442695
        %v2419 = vpow.pop %v2418
        %v2420 = vmul.f32 %v2329, 1.442695
        %v2421 = vpow.pop %v2420
        %v2422 = vmul.f32 %v2330, 1.442695
        %v2423 = vpow.pop %v2422
        %v2424 = vmul.f32 %v2331, 1.442695
        %v2425 = vpow.pop %v2424
        %v2426 = vmul.f32 %v2332, 1.442695
        %v2427 = vpow.pop %v2426
        %v2428 = vmul.f32 %v2333, 1.442695
        %v2429 = vpow.pop %v2428
        %2430 = vst [vmem:[%s490] sm:$0xff] %v2335
        %2431 = vst [vmem:[%s490 + $0x8] sm:$0xff] %v2337
        %2432 = vst [vmem:[%s490 + $0x10] sm:$0xff] %v2339
        %2433 = vst [vmem:[%s490 + $0x18] sm:$0xff] %v2341
        %2434 = vst [vmem:[%s490 + $0x20] sm:$0xff] %v2343
        %2435 = vst [vmem:[%s490 + $0x28] sm:$0xff] %v2345
        %2436 = vst [vmem:[%s490 + $0x30] sm:$0xff] %v2347
        %2437 = vst [vmem:[%s490 + $0x38] sm:$0xff] %v2349
        %2438 = vst [vmem:[%s490 + $0x40] sm:$0xff] %v2351
        %2439 = vst [vmem:[%s490 + $0x48] sm:$0xff] %v2353
        %2440 = vst [vmem:[%s490 + $0x50] sm:$0xff] %v2355
        %2441 = vst [vmem:[%s490 + $0x58] sm:$0xff] %v2357
        %2442 = vst [vmem:[%s490 + $0x60] sm:$0xff] %v2359
        %2443 = vst [vmem:[%s490 + $0x68] sm:$0xff] %v2361
        %2444 = vst [vmem:[%s490 + $0x70] sm:$0xff] %v2363
        %2445 = vst [vmem:[%s490 + $0x78] sm:$0xff] %v2365
        %2446 = vst [vmem:[%s490 + $0x80] sm:$0xff] %v2367
        %2447 = vst [vmem:[%s490 + $0x88] sm:$0xff] %v2369
        %2448 = vst [vmem:[%s490 + $0x90] sm:$0xff] %v2371
        %2449 = vst [vmem:[%s490 + $0x98] sm:$0xff] %v2373
        %2450 = vst [vmem:[%s490 + $0xa0] sm:$0xff] %v2375
        %2451 = vst [vmem:[%s490 + $0xa8] sm:$0xff] %v2377
        %2452 = vst [vmem:[%s490 + $0xb0] sm:$0xff] %v2379
        %2453 = vst [vmem:[%s490 + $0xb8] sm:$0xff] %v2381
        %2454 = vst [vmem:[%s490 + $0xc0] sm:$0xff] %v2383
        %2455 = vst [vmem:[%s490 + $0xc8] sm:$0xff] %v2385
        %2456 = vst [vmem:[%s490 + $0xd0] sm:$0xff] %v2387
        %2457 = vst [vmem:[%s490 + $0xd8] sm:$0xff] %v2389
        %2458 = vst [vmem:[%s490 + $0xe0] sm:$0xff] %v2391
        %2459 = vst [vmem:[%s490 + $0xe8] sm:$0xff] %v2393
        %2460 = vst [vmem:[%s490 + $0xf0] sm:$0xff] %v2395
        %2461 = vst [vmem:[%s490 + $0xf8] sm:$0xff] %v2397
        %2462 = vst [vmem:[%s490 + $0x100] sm:$0xff] %v2399
        %2463 = vst [vmem:[%s490 + $0x108] sm:$0xff] %v2401
        %2464 = vst [vmem:[%s490 + $0x110] sm:$0xff] %v2403
        %2465 = vst [vmem:[%s490 + $0x118] sm:$0xff] %v2405
        %2466 = vst [vmem:[%s490 + $0x120] sm:$0xff] %v2407
        %2467 = vst [vmem:[%s490 + $0x128] sm:$0xff] %v2409
        %2468 = vst [vmem:[%s490 + $0x130] sm:$0xff] %v2411
        %2469 = vst [vmem:[%s490 + $0x138] sm:$0xff] %v2413
        %2470 = vst [vmem:[%s490 + $0x140] sm:$0xff] %v2415
        %2471 = vst [vmem:[%s490 + $0x148] sm:$0xff] %v2417
        %2472 = vst [vmem:[%s490 + $0x150] sm:$0xff] %v2419
        %2473 = vst [vmem:[%s490 + $0x158] sm:$0xff] %v2421
        %2474 = vst [vmem:[%s490 + $0x160] sm:$0xff] %v2423
        %2475 = vst [vmem:[%s490 + $0x168] sm:$0xff] %v2425
        %2476 = vst [vmem:[%s490 + $0x170] sm:$0xff] %v2427
        %2477 = vst [vmem:[%s490 + $0x178] sm:$0xff] %v2429
        %v2478 = vld [vmem:[%s483] sm:$0xff]
        %v2479 = vld [vmem:[%s483 + $0x8] sm:$0xff]
        %v2480 = vld [vmem:[%s483 + $0x10] sm:$0xff]
        %v2481 = vld [vmem:[%s483 + $0x18] sm:$0xff]
        %v2482 = vld [vmem:[%s483 + $0x20] sm:$0xff]
        %v2483 = vld [vmem:[%s483 + $0x28] sm:$0xff]
        %v2484 = vld [vmem:[%s483 + $0x30] sm:$0xff]
        %v2485 = vld [vmem:[%s483 + $0x38] sm:$0xff]
        %v2486 = vld [vmem:[%s483 + $0x40] sm:$0xff]
        %v2487 = vld [vmem:[%s483 + $0x48] sm:$0xff]
        %v2488 = vld [vmem:[%s483 + $0x50] sm:$0xff]
        %v2489 = vld [vmem:[%s483 + $0x58] sm:$0xff]
        %v2490 = vld [vmem:[%s483 + $0x60] sm:$0xff]
        %v2491 = vld [vmem:[%s483 + $0x68] sm:$0xff]
        %v2492 = vld [vmem:[%s483 + $0x70] sm:$0xff]
        %v2493 = vld [vmem:[%s483 + $0x78] sm:$0xff]
        %v2494 = vld [vmem:[%s483 + $0x80] sm:$0xff]
        %v2495 = vld [vmem:[%s483 + $0x88] sm:$0xff]
        %v2496 = vld [vmem:[%s483 + $0x90] sm:$0xff]
        %v2497 = vld [vmem:[%s483 + $0x98] sm:$0xff]
        %v2498 = vld [vmem:[%s483 + $0xa0] sm:$0xff]
        %v2499 = vld [vmem:[%s483 + $0xa8] sm:$0xff]
        %v2500 = vld [vmem:[%s483 + $0xb0] sm:$0xff]
        %v2501 = vld [vmem:[%s483 + $0xb8] sm:$0xff]
        %v2502 = vld [vmem:[%s483 + $0xc0] sm:$0xff]
        %v2503 = vld [vmem:[%s483 + $0xc8] sm:$0xff]
        %v2504 = vld [vmem:[%s483 + $0xd0] sm:$0xff]
        %v2505 = vld [vmem:[%s483 + $0xd8] sm:$0xff]
        %v2506 = vld [vmem:[%s483 + $0xe0] sm:$0xff]
        %v2507 = vld [vmem:[%s483 + $0xe8] sm:$0xff]
        %v2508 = vld [vmem:[%s483 + $0xf0] sm:$0xff]
        %v2509 = vld [vmem:[%s483 + $0xf8] sm:$0xff]
        %v2510 = vld [vmem:[%s483 + $0x100] sm:$0xff]
        %v2511 = vld [vmem:[%s483 + $0x108] sm:$0xff]
        %v2512 = vld [vmem:[%s483 + $0x110] sm:$0xff]
        %v2513 = vld [vmem:[%s483 + $0x118] sm:$0xff]
        %v2514 = vld [vmem:[%s483 + $0x120] sm:$0xff]
        %v2515 = vld [vmem:[%s483 + $0x128] sm:$0xff]
        %v2516 = vld [vmem:[%s483 + $0x130] sm:$0xff]
        %v2517 = vld [vmem:[%s483 + $0x138] sm:$0xff]
        %v2518 = vld [vmem:[%s483 + $0x140] sm:$0xff]
        %v2519 = vld [vmem:[%s483 + $0x148] sm:$0xff]
        %v2520 = vld [vmem:[%s483 + $0x150] sm:$0xff]
        %v2521 = vld [vmem:[%s483 + $0x158] sm:$0xff]
        %v2522 = vld [vmem:[%s483 + $0x160] sm:$0xff]
        %v2523 = vld [vmem:[%s483 + $0x168] sm:$0xff]
        %v2524 = vld [vmem:[%s483 + $0x170] sm:$0xff]
        %v2525 = vld [vmem:[%s483 + $0x178] sm:$0xff]
        %v2526 = vld [vmem:[%s490] sm:$0xff]
        %v2527 = vld [vmem:[%s490 + $0x8] sm:$0xff]
        %v2528 = vld [vmem:[%s490 + $0x10] sm:$0xff]
        %v2529 = vld [vmem:[%s490 + $0x18] sm:$0xff]
        %v2530 = vld [vmem:[%s490 + $0x20] sm:$0xff]
        %v2531 = vld [vmem:[%s490 + $0x28] sm:$0xff]
        %v2532 = vld [vmem:[%s490 + $0x30] sm:$0xff]
        %v2533 = vld [vmem:[%s490 + $0x38] sm:$0xff]
        %v2534 = vld [vmem:[%s490 + $0x40] sm:$0xff]
        %v2535 = vld [vmem:[%s490 + $0x48] sm:$0xff]
        %v2536 = vld [vmem:[%s490 + $0x50] sm:$0xff]
        %v2537 = vld [vmem:[%s490 + $0x58] sm:$0xff]
        %v2538 = vld [vmem:[%s490 + $0x60] sm:$0xff]
        %v2539 = vld [vmem:[%s490 + $0x68] sm:$0xff]
        %v2540 = vld [vmem:[%s490 + $0x70] sm:$0xff]
        %v2541 = vld [vmem:[%s490 + $0x78] sm:$0xff]
        %v2542 = vld [vmem:[%s490 + $0x80] sm:$0xff]
        %v2543 = vld [vmem:[%s490 + $0x88] sm:$0xff]
        %v2544 = vld [vmem:[%s490 + $0x90] sm:$0xff]
        %v2545 = vld [vmem:[%s490 + $0x98] sm:$0xff]
        %v2546 = vld [vmem:[%s490 + $0xa0] sm:$0xff]
        %v2547 = vld [vmem:[%s490 + $0xa8] sm:$0xff]
        %v2548 = vld [vmem:[%s490 + $0xb0] sm:$0xff]
        %v2549 = vld [vmem:[%s490 + $0xb8] sm:$0xff]
        %v2550 = vld [vmem:[%s490 + $0xc0] sm:$0xff]
        %v2551 = vld [vmem:[%s490 + $0xc8] sm:$0xff]
        %v2552 = vld [vmem:[%s490 + $0xd0] sm:$0xff]
        %v2553 = vld [vmem:[%s490 + $0xd8] sm:$0xff]
        %v2554 = vld [vmem:[%s490 + $0xe0] sm:$0xff]
        %v2555 = vld [vmem:[%s490 + $0xe8] sm:$0xff]
        %v2556 = vld [vmem:[%s490 + $0xf0] sm:$0xff]
        %v2557 = vld [vmem:[%s490 + $0xf8] sm:$0xff]
        %v2558 = vld [vmem:[%s490 + $0x100] sm:$0xff]
        %v2559 = vld [vmem:[%s490 + $0x108] sm:$0xff]
        %v2560 = vld [vmem:[%s490 + $0x110] sm:$0xff]
        %v2561 = vld [vmem:[%s490 + $0x118] sm:$0xff]
        %v2562 = vld [vmem:[%s490 + $0x120] sm:$0xff]
        %v2563 = vld [vmem:[%s490 + $0x128] sm:$0xff]
        %v2564 = vld [vmem:[%s490 + $0x130] sm:$0xff]
        %v2565 = vld [vmem:[%s490 + $0x138] sm:$0xff]
        %v2566 = vld [vmem:[%s490 + $0x140] sm:$0xff]
        %v2567 = vld [vmem:[%s490 + $0x148] sm:$0xff]
        %v2568 = vld [vmem:[%s490 + $0x150] sm:$0xff]
        %v2569 = vld [vmem:[%s490 + $0x158] sm:$0xff]
        %v2570 = vld [vmem:[%s490 + $0x160] sm:$0xff]
        %v2571 = vld [vmem:[%s490 + $0x168] sm:$0xff]
        %v2572 = vld [vmem:[%s490 + $0x170] sm:$0xff]
        %v2573 = vld [vmem:[%s490 + $0x178] sm:$0xff]
        %v2574 = vmul.f32 %v2478, %v2526
        %v2575 = vmul.f32 %v2479, %v2527
        %v2576 = vmul.f32 %v2480, %v2528
        %v2577 = vmul.f32 %v2481, %v2529
        %v2578 = vmul.f32 %v2482, %v2530
        %v2579 = vmul.f32 %v2483, %v2531
        %v2580 = vmul.f32 %v2484, %v2532
        %v2581 = vmul.f32 %v2485, %v2533
        %v2582 = vmul.f32 %v2486, %v2534
        %v2583 = vmul.f32 %v2487, %v2535
        %v2584 = vmul.f32 %v2488, %v2536
        %v2585 = vmul.f32 %v2489, %v2537
        %v2586 = vmul.f32 %v2490, %v2538
        %v2587 = vmul.f32 %v2491, %v2539
        %v2588 = vmul.f32 %v2492, %v2540
        %v2589 = vmul.f32 %v2493, %v2541
        %v2590 = vmul.f32 %v2494, %v2542
        %v2591 = vmul.f32 %v2495, %v2543
        %v2592 = vmul.f32 %v2496, %v2544
        %v2593 = vmul.f32 %v2497, %v2545
        %v2594 = vmul.f32 %v2498, %v2546
        %v2595 = vmul.f32 %v2499, %v2547
        %v2596 = vmul.f32 %v2500, %v2548
        %v2597 = vmul.f32 %v2501, %v2549
        %v2598 = vmul.f32 %v2502, %v2550
        %v2599 = vmul.f32 %v2503, %v2551
        %v2600 = vmul.f32 %v2504, %v2552
        %v2601 = vmul.f32 %v2505, %v2553
        %v2602 = vmul.f32 %v2506, %v2554
        %v2603 = vmul.f32 %v2507, %v2555
        %v2604 = vmul.f32 %v2508, %v2556
        %v2605 = vmul.f32 %v2509, %v2557
        %v2606 = vmul.f32 %v2510, %v2558
        %v2607 = vmul.f32 %v2511, %v2559
        %v2608 = vmul.f32 %v2512, %v2560
        %v2609 = vmul.f32 %v2513, %v2561
        %v2610 = vmul.f32 %v2514, %v2562
        %v2611 = vmul.f32 %v2515, %v2563
        %v2612 = vmul.f32 %v2516, %v2564
        %v2613 = vmul.f32 %v2517, %v2565
        %v2614 = vmul.f32 %v2518, %v2566
        %v2615 = vmul.f32 %v2519, %v2567
        %v2616 = vmul.f32 %v2520, %v2568
        %v2617 = vmul.f32 %v2521, %v2569
        %v2618 = vmul.f32 %v2522, %v2570
        %v2619 = vmul.f32 %v2523, %v2571
        %v2620 = vmul.f32 %v2524, %v2572
        %v2621 = vmul.f32 %v2525, %v2573
        %2622 = vst [vmem:[%s497] sm:$0xff] %v2574
        %2623 = vst [vmem:[%s497 + $0x8] sm:$0xff] %v2575
        %2624 = vst [vmem:[%s497 + $0x10] sm:$0xff] %v2576
        %2625 = vst [vmem:[%s497 + $0x18] sm:$0xff] %v2577
        %2626 = vst [vmem:[%s497 + $0x20] sm:$0xff] %v2578
        %2627 = vst [vmem:[%s497 + $0x28] sm:$0xff] %v2579
        %2628 = vst [vmem:[%s497 + $0x30] sm:$0xff] %v2580
        %2629 = vst [vmem:[%s497 + $0x38] sm:$0xff] %v2581
        %2630 = vst [vmem:[%s497 + $0x40] sm:$0xff] %v2582
        %2631 = vst [vmem:[%s497 + $0x48] sm:$0xff] %v2583
        %2632 = vst [vmem:[%s497 + $0x50] sm:$0xff] %v2584
        %2633 = vst [vmem:[%s497 + $0x58] sm:$0xff] %v2585
        %2634 = vst [vmem:[%s497 + $0x60] sm:$0xff] %v2586
        %2635 = vst [vmem:[%s497 + $0x68] sm:$0xff] %v2587
        %2636 = vst [vmem:[%s497 + $0x70] sm:$0xff] %v2588
        %2637 = vst [vmem:[%s497 + $0x78] sm:$0xff] %v2589
        %2638 = vst [vmem:[%s497 + $0x80] sm:$0xff] %v2590
        %2639 = vst [vmem:[%s497 + $0x88] sm:$0xff] %v2591
        %2640 = vst [vmem:[%s497 + $0x90] sm:$0xff] %v2592
        %2641 = vst [vmem:[%s497 + $0x98] sm:$0xff] %v2593
        %2642 = vst [vmem:[%s497 + $0xa0] sm:$0xff] %v2594
        %2643 = vst [vmem:[%s497 + $0xa8] sm:$0xff] %v2595
        %2644 = vst [vmem:[%s497 + $0xb0] sm:$0xff] %v2596
        %2645 = vst [vmem:[%s497 + $0xb8] sm:$0xff] %v2597
        %2646 = vst [vmem:[%s497 + $0xc0] sm:$0xff] %v2598
        %2647 = vst [vmem:[%s497 + $0xc8] sm:$0xff] %v2599
        %2648 = vst [vmem:[%s497 + $0xd0] sm:$0xff] %v2600
        %2649 = vst [vmem:[%s497 + $0xd8] sm:$0xff] %v2601
        %2650 = vst [vmem:[%s497 + $0xe0] sm:$0xff] %v2602
        %2651 = vst [vmem:[%s497 + $0xe8] sm:$0xff] %v2603
        %2652 = vst [vmem:[%s497 + $0xf0] sm:$0xff] %v2604
        %2653 = vst [vmem:[%s497 + $0xf8] sm:$0xff] %v2605
        %2654 = vst [vmem:[%s497 + $0x100] sm:$0xff] %v2606
        %2655 = vst [vmem:[%s497 + $0x108] sm:$0xff] %v2607
        %2656 = vst [vmem:[%s497 + $0x110] sm:$0xff] %v2608
        %2657 = vst [vmem:[%s497 + $0x118] sm:$0xff] %v2609
        %2658 = vst [vmem:[%s497 + $0x120] sm:$0xff] %v2610
        %2659 = vst [vmem:[%s497 + $0x128] sm:$0xff] %v2611
        %2660 = vst [vmem:[%s497 + $0x130] sm:$0xff] %v2612
        %2661 = vst [vmem:[%s497 + $0x138] sm:$0xff] %v2613
        %2662 = vst [vmem:[%s497 + $0x140] sm:$0xff] %v2614
        %2663 = vst [vmem:[%s497 + $0x148] sm:$0xff] %v2615
        %2664 = vst [vmem:[%s497 + $0x150] sm:$0xff] %v2616
        %2665 = vst [vmem:[%s497 + $0x158] sm:$0xff] %v2617
        %2666 = vst [vmem:[%s497 + $0x160] sm:$0xff] %v2618
        %2667 = vst [vmem:[%s497 + $0x168] sm:$0xff] %v2619
        %2668 = vst [vmem:[%s497 + $0x170] sm:$0xff] %v2620
        %2669 = vst [vmem:[%s497 + $0x178] sm:$0xff] %v2621
        %s2670 = sand.u32 %s258, 1
        %s2671 = scalar_lea.sflag [#allocation3], %s2670
        %s2672 = sand.u32 %s258, 1
        %s2673 = smul.addr %s2672, 384
        %s2674 = scalar_lea.vmem [#allocation2], %s2673
        %s2675 = sand.u32 %s28, 1
        %s2676 = scalar_lea.sflag [#allocation5], %s2675
        %s2677 = sand.u32 %s286, 1
        %s2678 = smul.addr %s2677, 384
        %s2679 = scalar_lea.vmem [#allocation4], %s2678
        %s2680 = sand.u32 %s28, 1
        %s2681 = scalar_lea.sflag [#allocation5], %s2680
        %s2682 = sand.u32 %s314, 1
        %s2683 = smul.addr %s2682, 384
        %s2684 = scalar_lea.vmem [#allocation6], %s2683
        // Predicated region
        $region53: #{tpu_custom_call.1} parent=51 // pred_check
          %p2685 = pneg %p268
        $region54: #{tpu_custom_call.1} parent=51 // pred_check_branch
          %2687 = sbr.rel (%p2685) target = $region56
        $region55: #{tpu_custom_call.1} parent=51 // pred_region
          %s2688 = smul.u32 16, %s32
          %s2689 = smul.u32 3, %s33
          %s2691 = ssub.s32 6144, 6144
          %2692 = vsyncadd %s2671, %s2691
          %s2693 = smul.addr %s2688, 3
          %s2694 = sadd.s32 %s2689, %s2693
          %s2695 = smul.addr %s2694, 128
          %s2696 = scalar_lea.hbm %s8, %s2695
          %s2697 = sshll.u32 %s2674, 4
          %s2698 = int_to_ptr.vmem [resolvable:$true] %s2697
          %2703 = dma.vmem_to_hbm [thread:$0]  %s2698, 6144, %s2696, %s2671, 384, 384, 24
        $region56: #{tpu_custom_call.1} parent=51 // pred_fallthru
          _
        // Predicated region
        $region57: #{tpu_custom_call.1} parent=51 // pred_check
          %p2704 = pneg %p296
        $region58: #{tpu_custom_call.1} parent=51 // pred_check_branch
          %2706 = sbr.rel (%p2704) target = $region60
        $region59: #{tpu_custom_call.1} parent=51 // pred_region
          %s2707 = smul.u32 16, %s32
          %s2708 = smul.u32 3, %s33
          %s2710 = ssub.s32 6144, 6144
          %2711 = vsyncadd %s2676, %s2710
          %s2712 = smul.addr %s2707, 3
          %s2713 = sadd.s32 %s2708, %s2712
          %s2714 = smul.addr %s2713, 128
          %s2715 = scalar_lea.hbm %s9, %s2714
          %s2716 = sshll.u32 %s2679, 4
          %s2717 = int_to_ptr.vmem [resolvable:$true] %s2716
          %2722 = dma.vmem_to_hbm [thread:$0]  %s2717, 6144, %s2715, %s2676, 384, 384, 24
        $region60: #{tpu_custom_call.1} parent=51 // pred_fallthru
          _
        // Predicated region
        $region61: #{tpu_custom_call.1} parent=51 // pred_check
          %p2723 = pneg %p324
        $region62: #{tpu_custom_call.1} parent=51 // pred_check_branch
          %2725 = sbr.rel (%p2723) target = $region64
        $region63: #{tpu_custom_call.1} parent=51 // pred_region
          %s2726 = smul.u32 16, %s32
          %s2727 = smul.u32 3, %s33
          %s2729 = ssub.s32 6144, 6144
          %2730 = vsyncadd %s2681, %s2729
          %s2731 = smul.addr %s2726, 3
          %s2732 = sadd.s32 %s2727, %s2731
          %s2733 = smul.addr %s2732, 128
          %s2734 = scalar_lea.hbm %s10, %s2733
          %s2735 = sshll.u32 %s2684, 4
          %s2736 = int_to_ptr.vmem [resolvable:$true] %s2735
          %2741 = dma.vmem_to_hbm [thread:$0]  %s2736, 6144, %s2734, %s2681, 384, 384, 24
        $region64: #{tpu_custom_call.1} parent=51 // pred_fallthru
          _
      $region52: #{tpu_custom_call.1} parent=5 // pred_fallthru
        _
      %p2742 = scmp.le.s32.totalorder 2, %s23
      // Predicated region
      $region65: #{tpu_custom_call.1} parent=5 // pred_check
        %p2743 = pneg %p2742
      $region66: #{tpu_custom_call.1} parent=5 // pred_check_branch
        %2745 = sbr.rel (%p2743) target = $region68
      $region67: #{tpu_custom_call.1} parent=5 // pred_region
        %s2746 = ssub.s32 %s23, 2
        // Predicated region
        $region69: #{tpu_custom_call.1} parent=67 // pred_check
          %p2747 = pneg %p274
        $region70: #{tpu_custom_call.1} parent=67 // pred_check_branch
          %2749 = sbr.rel (%p2747) target = $region72
        $region71: #{tpu_custom_call.1} parent=67 // pred_region
          %s2750 = sand.u32 %s259, 1
          %s2751 = scalar_lea.sflag [#allocation3], %s2750
          %s2752 = sand.u32 %s259, 1
          %s2753 = smul.addr %s2752, 384
          %s2754 = scalar_lea.vmem [#allocation2], %s2753
          %2755 = dma.done %s2751, 6144
        $region72: #{tpu_custom_call.1} parent=67 // pred_fallthru
          _
        // Predicated region
        $region73: #{tpu_custom_call.1} parent=67 // pred_check
          %p2756 = pneg %p302
        $region74: #{tpu_custom_call.1} parent=67 // pred_check_branch
          %2758 = sbr.rel (%p2756) target = $region76
        $region75: #{tpu_custom_call.1} parent=67 // pred_region
          %s2759 = sand.u32 %s29, 1
          %s2760 = scalar_lea.sflag [#allocation5], %s2759
          %s2761 = sand.u32 %s287, 1
          %s2762 = smul.addr %s2761, 384
          %s2763 = scalar_lea.vmem [#allocation4], %s2762
          %2764 = dma.done %s2760, 6144
        $region76: #{tpu_custom_call.1} parent=67 // pred_fallthru
          _
        // Predicated region
        $region77: #{tpu_custom_call.1} parent=67 // pred_check
          %p2765 = pneg %p330
        $region78: #{tpu_custom_call.1} parent=67 // pred_check_branch
          %2767 = sbr.rel (%p2765) target = $region80
        $region79: #{tpu_custom_call.1} parent=67 // pred_region
          %s2768 = sand.u32 %s29, 1
          %s2769 = scalar_lea.sflag [#allocation5], %s2768
          %s2770 = sand.u32 %s315, 1
          %s2771 = smul.addr %s2770, 384
          %s2772 = scalar_lea.vmem [#allocation6], %s2771
          %2773 = dma.done %s2769, 6144
        $region80: #{tpu_custom_call.1} parent=67 // pred_fallthru
          _
      $region68: #{tpu_custom_call.1} parent=5 // pred_fallthru
        _
    $region6: #{tpu_custom_call.1} parent=1 // loop_footer
      %s27 = sadd.s32 1, %s23
    $region7: #{tpu_custom_call.1} parent=1 // loop_footer_branch
      %22 = sbr.rel target = $region3
    $region8: #{tpu_custom_call.1} parent=1 // loop_exit
      _
    %2774 = vsyncpa [#allocation3], 1
    %s2775 = scalar_lea.sflag [#allocation3], 1
    %2776 = vsyncpa %s2775, 1
    %2777 = vsyncpa [#allocation5], 1
    %s2778 = scalar_lea.sflag [#allocation5], 1
    %2779 = vsyncpa %s2778, 1

</llo_original>
